<compile_context>
chip_gen: v6e
topology: v6e:2x2x1
jax: 0.10.0
libtpu: 0.0.40
codegen_flags: <defaults>
</compile_context>

<pallas_src>
import functools

import jax
import jax.numpy as jnp
import numpy as np
from jax.experimental import pallas as pl
from jax.experimental.pallas import tpu as pltpu


def mha_kqv_kernel(xq_ref, xk_ref, xv_ref,
                   wq_ref, bq_ref, wk_ref, bk_ref, wv_ref, bv_ref,
                   wo_ref, bo_ref, ind_ref, indt_ref,
                   o_ref, *, num_heads, head_dim, scaling):
    """One grid step == one batch element (all N = C*L rows of that batch)."""
    H, Dh = num_heads, head_dim
    f32 = jnp.float32

    xk = xk_ref[0]                      # (N, E)
    xv = xv_ref[0]                      # (N, E)
    xq = xq_ref[0]                      # (1, E)

    # --- Projections: f32 in, f32 accumulate, all on the MXU ---
    k = jnp.dot(xk, wk_ref[...], preferred_element_type=f32) + bk_ref[...]   # (N, E)
    v = jnp.dot(xv, wv_ref[...], preferred_element_type=f32) + bv_ref[...]   # (N, E)
    q = jnp.dot(xq, wq_ref[...], preferred_element_type=f32) + bq_ref[...]   # (1, E)
    qs = q * scaling                    # fold 1/sqrt(Dh) into q once

    ind = ind_ref[...]                  # (E, H)  ind[e, j] = 1 iff e // Dh == j
    indt = indt_ref[...]                # (H, E)  its transpose
    woT = wo_ref[...]                   # (E, Dout)
    bo = bo_ref[...]                    # (1, Dout)

    out_acc = None
    for i in range(H):                  # static unroll, H is tiny
        # Query head i tiled across every key-head lane block: (1, E)
        qi_t = jnp.tile(qs[:, i * Dh:(i + 1) * Dh], (1, H))
        # Scores vs all key heads: elementwise product + MXU block reduction
        # (replaces the per-pair XLU axis=-1 reductions): (N, H)
        s_i = jnp.dot(k * qi_t, ind, preferred_element_type=f32)
        # Softmax over key heads, exact normalization, one (N,H) temp live.
        m = jnp.max(s_i, axis=-1, keepdims=True)
        p = jnp.exp(s_i - m)
        p = p / jnp.sum(p, axis=-1, keepdims=True)
        # Expand softmax weights back onto the Dh lane blocks and weight v: (N, E)
        weighted = jnp.dot(p, indt, preferred_element_type=f32) * v
        # Fused block-sum + output projection for head i: Wo rows of head i tiled
        # over the key-head blocks -> contrib = (sum_j p_j * v_j) @ WoT_i as one
        # K=E matmul (no K=8 matmuls, no attn scratch).
        wo_i = jnp.tile(woT[i * Dh:(i + 1) * Dh, :], (H, 1))                 # (E, Dout)
        contrib = jnp.dot(weighted, wo_i, preferred_element_type=f32)        # (N, Dout)
        out_acc = contrib if out_acc is None else out_acc + contrib

    # TODO(synk): attention_mask (optional additive mask before softmax) not wired
    # in; this implements the attention_mask=None path. Dropout(p=0.0) is identity.
    o_ref[0] = (out_acc + bo).astype(o_ref.dtype)


@functools.partial(jax.jit, static_argnums=(4,))
def mha_kqv(xk, xq, xv, params, num_heads):
    """Wrapper: free reshapes only, then one pallas_call. xk/xv: (B,C,L,E), xq: (B,E)."""
    B, C, L, E = xk.shape
    N = C * L
    assert E % num_heads == 0
    Dh = E // num_heads
    wk, bk, wq, bq, wv, bv, wo, bo = params
    Dout = wo.shape[0]
    scaling = float(Dh) ** -0.5

    # Free reshapes (no pads, no casts, no repeats): lanes stay unpadded at E / Dout.
    xk3 = xk.reshape(B, N, E)
    xv3 = xv.reshape(B, N, E)
    xq3 = xq.reshape(B, 1, E)

    # (in, out)-layout weights and 2-D biases (tiny, fused under jit).
    wkT, wvT, wqT, woT = wk.T, wv.T, wq.T, wo.T
    bk2 = bk.reshape(1, E)
    bv2 = bv.reshape(1, E)
    bq2 = bq.reshape(1, E)
    bo2 = bo.reshape(1, Dout)

    # Constant head-block indicator matrices (compile-time constants).
    ind = jnp.asarray(np.repeat(np.eye(num_heads, dtype=np.float32), Dh, axis=0))   # (E, H)
    indt = jnp.asarray(np.repeat(np.eye(num_heads, dtype=np.float32), Dh, axis=1))  # (H, E)

    kernel = functools.partial(mha_kqv_kernel, num_heads=num_heads,
                               head_dim=Dh, scaling=scaling)

    def full(shape):  # whole-array operand, resident across all grid steps
        return pl.BlockSpec(shape, lambda b: (0, 0))

    out = pl.pallas_call(
        kernel,
        out_shape=jax.ShapeDtypeStruct((B, N, Dout), xk.dtype),
        grid_spec=pltpu.PrefetchScalarGridSpec(
            num_scalar_prefetch=0,
            grid=(B,),
            in_specs=[
                pl.BlockSpec((1, 1, E), lambda b: (b, 0, 0)),   # xq row of batch b
                pl.BlockSpec((1, N, E), lambda b: (b, 0, 0)),   # xk rows of batch b
                pl.BlockSpec((1, N, E), lambda b: (b, 0, 0)),   # xv rows of batch b
                full((E, E)), full((1, E)),                     # Wq^T, bq
                full((E, E)), full((1, E)),                     # Wk^T, bk
                full((E, E)), full((1, E)),                     # Wv^T, bv
                full((E, Dout)), full((1, Dout)),               # Wo^T, bo
                full((E, num_heads)), full((num_heads, E)),     # ind, ind^T
            ],
            out_specs=pl.BlockSpec((1, N, Dout), lambda b: (b, 0, 0)),
        ),
        compiler_params=pltpu.CompilerParams(
            dimension_semantics=("parallel",)),
    )(xq3, xk3, xv3, wqT, bq2, wkT, bk2, wvT, bv2, woT, bo2, ind, indt)

    return out.reshape(B, C, L, Dout)


def mha_kqv_ref(xk, xq, xv, params, num_heads):
    """Pure-JAX reference mirroring the PyTorch forward (mask=None, dropout=0)."""
    B, C, L, E = xk.shape
    head_dim = E // num_heads
    wk, bk, wq, bq, wv, bv, wo, bo = params
    scaling = head_dim ** -0.5
    q = (xq @ wq.T + bq).reshape(B, num_heads, head_dim)
    k = (xk @ wk.T + bk).reshape(B, C * L, num_heads, head_dim)
    v = (xv @ wv.T + bv).reshape(B, C * L, num_heads, head_dim)
    w = scaling * jnp.einsum('bid,bnjd->bnij', q, k)
    w = jax.nn.softmax(w, axis=-1)
    out = jnp.einsum('bnij,bnjd->bnid', w, v).reshape(B, C, L, E)
    return out @ wo.T + bo


if __name__ == "__main__":
    # Small shapes consistent with the module's forward.
    B, C, L, E, H = 2, 4, 8, 32, 4          # embed_dim=32, num_heads=4, head_dim=8

    key = jax.random.PRNGKey(0)
    keys = jax.random.split(key, 11)
    bound = 1.0 / (E ** 0.5)                # PyTorch nn.Linear default init range

    def u(k, shape):
        return jax.random.uniform(k, shape, jnp.float32, -bound, bound)

    wk, bk = u(keys[0], (E, E)), u(keys[1], (E,))
    wq, bq = u(keys[2], (E, E)), u(keys[3], (E,))
    wv, bv = u(keys[4], (E, E)), u(keys[5], (E,))
    wo, bo = u(keys[6], (E, E)), u(keys[7], (E,))   # out_dim = None -> embed_dim
    params = (wk, bk, wq, bq, wv, bv, wo, bo)

    xk = jax.random.normal(keys[8], (B, C, L, E), jnp.float32)
    xq = jax.random.normal(keys[9], (B, E), jnp.float32)
    xv = jax.random.normal(keys[10], (B, C, L, E), jnp.float32)

    out = jax.block_until_ready(mha_kqv(xk, xq, xv, params, H))
    assert out.shape == (B, C, L, E), out.shape

    ref = mha_kqv_ref(xk, xq, xv, params, H)
    err = float(jnp.max(jnp.abs(out - ref)))
    # f32 end-to-end now (no bf16 round trips, exact softmax normalization);
    # tolerance only covers MXU accumulation-order / pass differences.
    if not jnp.allclose(out, ref, rtol=1e-2, atol=1e-2):
        raise AssertionError(f"mismatch vs reference, max abs err = {err}")

    print("KERNEL_OK")
</pallas_src>

<mosaic_0001>
module attributes {stable_mosaic.version = 11 : i64} {
  func.func @mha_kqv_kernel(%arg0: i32, %arg1: memref<1x1x32xf32, #tpu.memory_space<vmem>>, %arg2: memref<1x32x32xf32, #tpu.memory_space<vmem>>, %arg3: memref<1x32x32xf32, #tpu.memory_space<vmem>>, %arg4: memref<32x32xf32, #tpu.memory_space<vmem>>, %arg5: memref<1x32xf32, #tpu.memory_space<vmem>>, %arg6: memref<32x32xf32, #tpu.memory_space<vmem>>, %arg7: memref<1x32xf32, #tpu.memory_space<vmem>>, %arg8: memref<32x32xf32, #tpu.memory_space<vmem>>, %arg9: memref<1x32xf32, #tpu.memory_space<vmem>>, %arg10: memref<32x32xf32, #tpu.memory_space<vmem>>, %arg11: memref<1x32xf32, #tpu.memory_space<vmem>>, %arg12: memref<32x4xf32, #tpu.memory_space<vmem>>, %arg13: memref<4x32xf32, #tpu.memory_space<vmem>>, %arg14: memref<1x32x32xf32, #tpu.memory_space<vmem>>) attributes {dimension_semantics = [#tpu.dimension_semantics<parallel>], iteration_bounds = array<i64: 2>, scalar_prefetch = 0 : i64, scratch_operands = 0 : i64, tpu.core_type = #tpu.core_type<tc>, window_params = [{transform_indices = @transform_0, window_bounds = array<i64: 1, 1, 32>}, {transform_indices = @transform_1, window_bounds = array<i64: 1, 32, 32>}, {transform_indices = @transform_2, window_bounds = array<i64: 1, 32, 32>}, {pipeline_mode = #tpu.pipeline_mode<synchronous>, transform_indices = @transform_3, window_bounds = array<i64: 32, 32>}, {pipeline_mode = #tpu.pipeline_mode<synchronous>, transform_indices = @transform_4, window_bounds = array<i64: 1, 32>}, {pipeline_mode = #tpu.pipeline_mode<synchronous>, transform_indices = @transform_5, window_bounds = array<i64: 32, 32>}, {pipeline_mode = #tpu.pipeline_mode<synchronous>, transform_indices = @transform_6, window_bounds = array<i64: 1, 32>}, {pipeline_mode = #tpu.pipeline_mode<synchronous>, transform_indices = @transform_7, window_bounds = array<i64: 32, 32>}, {pipeline_mode = #tpu.pipeline_mode<synchronous>, transform_indices = @transform_8, window_bounds = array<i64: 1, 32>}, {pipeline_mode = #tpu.pipeline_mode<synchronous>, transform_indices = @transform_9, window_bounds = array<i64: 32, 32>}, {pipeline_mode = #tpu.pipeline_mode<synchronous>, transform_indices = @transform_10, window_bounds = array<i64: 1, 32>}, {pipeline_mode = #tpu.pipeline_mode<synchronous>, transform_indices = @transform_11, window_bounds = array<i64: 32, 4>}, {pipeline_mode = #tpu.pipeline_mode<synchronous>, transform_indices = @transform_12, window_bounds = array<i64: 4, 32>}, {transform_indices = @transform_13, window_bounds = array<i64: 1, 32, 32>}]} {
    %c0 = arith.constant 0 : index
    %c0_0 = arith.constant 0 : index
    %c0_1 = arith.constant 0 : index
    %0 = vector.load %arg2[%c0, %c0_0, %c0_1] : memref<1x32x32xf32, #tpu.memory_space<vmem>>, vector<1x32x32xf32>
    %1 = vector.shape_cast %0 : vector<1x32x32xf32> to vector<32x32xf32>
    %c0_2 = arith.constant 0 : index
    %c0_3 = arith.constant 0 : index
    %c0_4 = arith.constant 0 : index
    %2 = vector.load %arg3[%c0_2, %c0_3, %c0_4] : memref<1x32x32xf32, #tpu.memory_space<vmem>>, vector<1x32x32xf32>
    %3 = vector.shape_cast %2 : vector<1x32x32xf32> to vector<32x32xf32>
    %c0_5 = arith.constant 0 : index
    %c0_6 = arith.constant 0 : index
    %c0_7 = arith.constant 0 : index
    %4 = vector.load %arg1[%c0_5, %c0_6, %c0_7] : memref<1x1x32xf32, #tpu.memory_space<vmem>>, vector<1x1x32xf32>
    %5 = vector.shape_cast %4 : vector<1x1x32xf32> to vector<1x32xf32>
    %c0_8 = arith.constant 0 : index
    %c0_9 = arith.constant 0 : index
    %6 = vector.load %arg6[%c0_8, %c0_9] : memref<32x32xf32, #tpu.memory_space<vmem>>, vector<32x32xf32>
    %cst = arith.constant dense<0.000000e+00> : vector<32x32xf32>
    %7 = tpu.matmul %1, %6, %cst {dimension_numbers = #tpu.dot_dimension_numbers<[1], [0], [0], [1], [0, 0, 1, 1], [], []>} : vector<32x32xf32>, vector<32x32xf32>, vector<32x32xf32> -> vector<32x32xf32>
    %c0_10 = arith.constant 0 : index
    %c0_11 = arith.constant 0 : index
    %8 = vector.load %arg7[%c0_10, %c0_11] : memref<1x32xf32, #tpu.memory_space<vmem>>, vector<1x32xf32>
    %9 = vector.broadcast %8 : vector<1x32xf32> to vector<32x32xf32>
    %10 = arith.addf %7, %9 : vector<32x32xf32>
    %c0_12 = arith.constant 0 : index
    %c0_13 = arith.constant 0 : index
    %11 = vector.load %arg8[%c0_12, %c0_13] : memref<32x32xf32, #tpu.memory_space<vmem>>, vector<32x32xf32>
    %cst_14 = arith.constant dense<0.000000e+00> : vector<32x32xf32>
    %12 = tpu.matmul %3, %11, %cst_14 {dimension_numbers = #tpu.dot_dimension_numbers<[1], [0], [0], [1], [0, 0, 1, 1], [], []>} : vector<32x32xf32>, vector<32x32xf32>, vector<32x32xf32> -> vector<32x32xf32>
    %c0_15 = arith.constant 0 : index
    %c0_16 = arith.constant 0 : index
    %13 = vector.load %arg9[%c0_15, %c0_16] : memref<1x32xf32, #tpu.memory_space<vmem>>, vector<1x32xf32>
    %14 = vector.broadcast %13 : vector<1x32xf32> to vector<32x32xf32>
    %15 = arith.addf %12, %14 : vector<32x32xf32>
    %c0_17 = arith.constant 0 : index
    %c0_18 = arith.constant 0 : index
    %16 = vector.load %arg4[%c0_17, %c0_18] : memref<32x32xf32, #tpu.memory_space<vmem>>, vector<32x32xf32>
    %cst_19 = arith.constant dense<0.000000e+00> : vector<1x32xf32>
    %17 = tpu.matmul %5, %16, %cst_19 {dimension_numbers = #tpu.dot_dimension_numbers<[1], [0], [0], [1], [0, 0, 1, 1], [], []>} : vector<1x32xf32>, vector<32x32xf32>, vector<1x32xf32> -> vector<1x32xf32>
    %c0_20 = arith.constant 0 : index
    %c0_21 = arith.constant 0 : index
    %18 = vector.load %arg5[%c0_20, %c0_21] : memref<1x32xf32, #tpu.memory_space<vmem>>, vector<1x32xf32>
    %19 = arith.addf %17, %18 : vector<1x32xf32>
    %cst_22 = arith.constant 0.353553385 : f32
    %20 = vector.broadcast %cst_22 : f32 to vector<1x32xf32>
    %21 = arith.mulf %19, %20 : vector<1x32xf32>
    %c0_23 = arith.constant 0 : index
    %c0_24 = arith.constant 0 : index
    %22 = vector.load %arg12[%c0_23, %c0_24] : memref<32x4xf32, #tpu.memory_space<vmem>>, vector<32x4xf32>
    %c0_25 = arith.constant 0 : index
    %c0_26 = arith.constant 0 : index
    %23 = vector.load %arg13[%c0_25, %c0_26] : memref<4x32xf32, #tpu.memory_space<vmem>>, vector<4x32xf32>
    %c0_27 = arith.constant 0 : index
    %c0_28 = arith.constant 0 : index
    %24 = vector.load %arg10[%c0_27, %c0_28] : memref<32x32xf32, #tpu.memory_space<vmem>>, vector<32x32xf32>
    %c0_29 = arith.constant 0 : index
    %c0_30 = arith.constant 0 : index
    %25 = vector.load %arg11[%c0_29, %c0_30] : memref<1x32xf32, #tpu.memory_space<vmem>>, vector<1x32xf32>
    %26 = vector.extract_strided_slice %21 {offsets = [0, 0], sizes = [1, 8], strides = [1, 1]} : vector<1x32xf32> to vector<1x8xf32>
    %27 = tpu.concatenate %26, %26, %26, %26 in 1 : vector<1x8xf32>, vector<1x8xf32>, vector<1x8xf32>, vector<1x8xf32> -> vector<1x32xf32>
    %28 = vector.broadcast %27 : vector<1x32xf32> to vector<32x32xf32>
    %29 = arith.mulf %10, %28 : vector<32x32xf32>
    %cst_31 = arith.constant dense<0.000000e+00> : vector<32x4xf32>
    %30 = tpu.matmul %29, %22, %cst_31 {dimension_numbers = #tpu.dot_dimension_numbers<[1], [0], [0], [1], [0, 0, 1, 1], [], []>} : vector<32x32xf32>, vector<32x4xf32>, vector<32x4xf32> -> vector<32x4xf32>
    %cst_32 = arith.constant dense<0xFF800000> : vector<32xf32>
    %31 = vector.multi_reduction <maximumf>, %30, %cst_32 [1] : vector<32x4xf32> to vector<32xf32>
    %32 = vector.shape_cast %31 : vector<32xf32> to vector<32x1xf32>
    %33 = vector.broadcast %32 : vector<32x1xf32> to vector<32x4xf32>
    %34 = arith.subf %30, %33 : vector<32x4xf32>
    %35 = math.exp %34 : vector<32x4xf32>
    %cst_33 = arith.constant dense<0.000000e+00> : vector<32xf32>
    %36 = vector.multi_reduction <add>, %35, %cst_33 [1] : vector<32x4xf32> to vector<32xf32>
    %37 = vector.shape_cast %36 : vector<32xf32> to vector<32x1xf32>
    %38 = vector.broadcast %37 : vector<32x1xf32> to vector<32x4xf32>
    %39 = arith.divf %35, %38 : vector<32x4xf32>
    %cst_34 = arith.constant dense<0.000000e+00> : vector<32x32xf32>
    %40 = tpu.matmul %39, %23, %cst_34 {dimension_numbers = #tpu.dot_dimension_numbers<[1], [0], [0], [1], [0, 0, 1, 1], [], []>} : vector<32x4xf32>, vector<4x32xf32>, vector<32x32xf32> -> vector<32x32xf32>
    %41 = arith.mulf %40, %15 : vector<32x32xf32>
    %42 = vector.extract_strided_slice %24 {offsets = [0, 0], sizes = [8, 32], strides = [1, 1]} : vector<32x32xf32> to vector<8x32xf32>
    %43 = tpu.concatenate %42, %42, %42, %42 in 0 : vector<8x32xf32>, vector<8x32xf32>, vector<8x32xf32>, vector<8x32xf32> -> vector<32x32xf32>
    %cst_35 = arith.constant dense<0.000000e+00> : vector<32x32xf32>
    %44 = tpu.matmul %41, %43, %cst_35 {dimension_numbers = #tpu.dot_dimension_numbers<[1], [0], [0], [1], [0, 0, 1, 1], [], []>} : vector<32x32xf32>, vector<32x32xf32>, vector<32x32xf32> -> vector<32x32xf32>
    %45 = vector.extract_strided_slice %21 {offsets = [0, 8], sizes = [1, 8], strides = [1, 1]} : vector<1x32xf32> to vector<1x8xf32>
    %46 = tpu.concatenate %45, %45, %45, %45 in 1 : vector<1x8xf32>, vector<1x8xf32>, vector<1x8xf32>, vector<1x8xf32> -> vector<1x32xf32>
    %47 = vector.broadcast %46 : vector<1x32xf32> to vector<32x32xf32>
    %48 = arith.mulf %10, %47 : vector<32x32xf32>
    %cst_36 = arith.constant dense<0.000000e+00> : vector<32x4xf32>
    %49 = tpu.matmul %48, %22, %cst_36 {dimension_numbers = #tpu.dot_dimension_numbers<[1], [0], [0], [1], [0, 0, 1, 1], [], []>} : vector<32x32xf32>, vector<32x4xf32>, vector<32x4xf32> -> vector<32x4xf32>
    %cst_37 = arith.constant dense<0xFF800000> : vector<32xf32>
    %50 = vector.multi_reduction <maximumf>, %49, %cst_37 [1] : vector<32x4xf32> to vector<32xf32>
    %51 = vector.shape_cast %50 : vector<32xf32> to vector<32x1xf32>
    %52 = vector.broadcast %51 : vector<32x1xf32> to vector<32x4xf32>
    %53 = arith.subf %49, %52 : vector<32x4xf32>
    %54 = math.exp %53 : vector<32x4xf32>
    %cst_38 = arith.constant dense<0.000000e+00> : vector<32xf32>
    %55 = vector.multi_reduction <add>, %54, %cst_38 [1] : vector<32x4xf32> to vector<32xf32>
    %56 = vector.shape_cast %55 : vector<32xf32> to vector<32x1xf32>
    %57 = vector.broadcast %56 : vector<32x1xf32> to vector<32x4xf32>
    %58 = arith.divf %54, %57 : vector<32x4xf32>
    %cst_39 = arith.constant dense<0.000000e+00> : vector<32x32xf32>
    %59 = tpu.matmul %58, %23, %cst_39 {dimension_numbers = #tpu.dot_dimension_numbers<[1], [0], [0], [1], [0, 0, 1, 1], [], []>} : vector<32x4xf32>, vector<4x32xf32>, vector<32x32xf32> -> vector<32x32xf32>
    %60 = arith.mulf %59, %15 : vector<32x32xf32>
    %61 = vector.extract_strided_slice %24 {offsets = [8, 0], sizes = [8, 32], strides = [1, 1]} : vector<32x32xf32> to vector<8x32xf32>
    %62 = tpu.concatenate %61, %61, %61, %61 in 0 : vector<8x32xf32>, vector<8x32xf32>, vector<8x32xf32>, vector<8x32xf32> -> vector<32x32xf32>
    %cst_40 = arith.constant dense<0.000000e+00> : vector<32x32xf32>
    %63 = tpu.matmul %60, %62, %cst_40 {dimension_numbers = #tpu.dot_dimension_numbers<[1], [0], [0], [1], [0, 0, 1, 1], [], []>} : vector<32x32xf32>, vector<32x32xf32>, vector<32x32xf32> -> vector<32x32xf32>
    %64 = arith.addf %44, %63 : vector<32x32xf32>
    %65 = vector.extract_strided_slice %21 {offsets = [0, 16], sizes = [1, 8], strides = [1, 1]} : vector<1x32xf32> to vector<1x8xf32>
    %66 = tpu.concatenate %65, %65, %65, %65 in 1 : vector<1x8xf32>, vector<1x8xf32>, vector<1x8xf32>, vector<1x8xf32> -> vector<1x32xf32>
    %67 = vector.broadcast %66 : vector<1x32xf32> to vector<32x32xf32>
    %68 = arith.mulf %10, %67 : vector<32x32xf32>
    %cst_41 = arith.constant dense<0.000000e+00> : vector<32x4xf32>
    %69 = tpu.matmul %68, %22, %cst_41 {dimension_numbers = #tpu.dot_dimension_numbers<[1], [0], [0], [1], [0, 0, 1, 1], [], []>} : vector<32x32xf32>, vector<32x4xf32>, vector<32x4xf32> -> vector<32x4xf32>
    %cst_42 = arith.constant dense<0xFF800000> : vector<32xf32>
    %70 = vector.multi_reduction <maximumf>, %69, %cst_42 [1] : vector<32x4xf32> to vector<32xf32>
    %71 = vector.shape_cast %70 : vector<32xf32> to vector<32x1xf32>
    %72 = vector.broadcast %71 : vector<32x1xf32> to vector<32x4xf32>
    %73 = arith.subf %69, %72 : vector<32x4xf32>
    %74 = math.exp %73 : vector<32x4xf32>
    %cst_43 = arith.constant dense<0.000000e+00> : vector<32xf32>
    %75 = vector.multi_reduction <add>, %74, %cst_43 [1] : vector<32x4xf32> to vector<32xf32>
    %76 = vector.shape_cast %75 : vector<32xf32> to vector<32x1xf32>
    %77 = vector.broadcast %76 : vector<32x1xf32> to vector<32x4xf32>
    %78 = arith.divf %74, %77 : vector<32x4xf32>
    %cst_44 = arith.constant dense<0.000000e+00> : vector<32x32xf32>
    %79 = tpu.matmul %78, %23, %cst_44 {dimension_numbers = #tpu.dot_dimension_numbers<[1], [0], [0], [1], [0, 0, 1, 1], [], []>} : vector<32x4xf32>, vector<4x32xf32>, vector<32x32xf32> -> vector<32x32xf32>
    %80 = arith.mulf %79, %15 : vector<32x32xf32>
    %81 = vector.extract_strided_slice %24 {offsets = [16, 0], sizes = [8, 32], strides = [1, 1]} : vector<32x32xf32> to vector<8x32xf32>
    %82 = tpu.concatenate %81, %81, %81, %81 in 0 : vector<8x32xf32>, vector<8x32xf32>, vector<8x32xf32>, vector<8x32xf32> -> vector<32x32xf32>
    %cst_45 = arith.constant dense<0.000000e+00> : vector<32x32xf32>
    %83 = tpu.matmul %80, %82, %cst_45 {dimension_numbers = #tpu.dot_dimension_numbers<[1], [0], [0], [1], [0, 0, 1, 1], [], []>} : vector<32x32xf32>, vector<32x32xf32>, vector<32x32xf32> -> vector<32x32xf32>
    %84 = arith.addf %64, %83 : vector<32x32xf32>
    %85 = vector.extract_strided_slice %21 {offsets = [0, 24], sizes = [1, 8], strides = [1, 1]} : vector<1x32xf32> to vector<1x8xf32>
    %86 = tpu.concatenate %85, %85, %85, %85 in 1 : vector<1x8xf32>, vector<1x8xf32>, vector<1x8xf32>, vector<1x8xf32> -> vector<1x32xf32>
    %87 = vector.broadcast %86 : vector<1x32xf32> to vector<32x32xf32>
    %88 = arith.mulf %10, %87 : vector<32x32xf32>
    %cst_46 = arith.constant dense<0.000000e+00> : vector<32x4xf32>
    %89 = tpu.matmul %88, %22, %cst_46 {dimension_numbers = #tpu.dot_dimension_numbers<[1], [0], [0], [1], [0, 0, 1, 1], [], []>} : vector<32x32xf32>, vector<32x4xf32>, vector<32x4xf32> -> vector<32x4xf32>
    %cst_47 = arith.constant dense<0xFF800000> : vector<32xf32>
    %90 = vector.multi_reduction <maximumf>, %89, %cst_47 [1] : vector<32x4xf32> to vector<32xf32>
    %91 = vector.shape_cast %90 : vector<32xf32> to vector<32x1xf32>
    %92 = vector.broadcast %91 : vector<32x1xf32> to vector<32x4xf32>
    %93 = arith.subf %89, %92 : vector<32x4xf32>
    %94 = math.exp %93 : vector<32x4xf32>
    %cst_48 = arith.constant dense<0.000000e+00> : vector<32xf32>
    %95 = vector.multi_reduction <add>, %94, %cst_48 [1] : vector<32x4xf32> to vector<32xf32>
    %96 = vector.shape_cast %95 : vector<32xf32> to vector<32x1xf32>
    %97 = vector.broadcast %96 : vector<32x1xf32> to vector<32x4xf32>
    %98 = arith.divf %94, %97 : vector<32x4xf32>
    %cst_49 = arith.constant dense<0.000000e+00> : vector<32x32xf32>
    %99 = tpu.matmul %98, %23, %cst_49 {dimension_numbers = #tpu.dot_dimension_numbers<[1], [0], [0], [1], [0, 0, 1, 1], [], []>} : vector<32x4xf32>, vector<4x32xf32>, vector<32x32xf32> -> vector<32x32xf32>
    %100 = arith.mulf %99, %15 : vector<32x32xf32>
    %101 = vector.extract_strided_slice %24 {offsets = [24, 0], sizes = [8, 32], strides = [1, 1]} : vector<32x32xf32> to vector<8x32xf32>
    %102 = tpu.concatenate %101, %101, %101, %101 in 0 : vector<8x32xf32>, vector<8x32xf32>, vector<8x32xf32>, vector<8x32xf32> -> vector<32x32xf32>
    %cst_50 = arith.constant dense<0.000000e+00> : vector<32x32xf32>
    %103 = tpu.matmul %100, %102, %cst_50 {dimension_numbers = #tpu.dot_dimension_numbers<[1], [0], [0], [1], [0, 0, 1, 1], [], []>} : vector<32x32xf32>, vector<32x32xf32>, vector<32x32xf32> -> vector<32x32xf32>
    %104 = arith.addf %84, %103 : vector<32x32xf32>
    %105 = vector.broadcast %25 : vector<1x32xf32> to vector<32x32xf32>
    %106 = arith.addf %104, %105 : vector<32x32xf32>
    %c0_51 = arith.constant 0 : index
    %c0_52 = arith.constant 0 : index
    %c0_53 = arith.constant 0 : index
    %107 = vector.load %arg14[%c0_51, %c0_52, %c0_53] : memref<1x32x32xf32, #tpu.memory_space<vmem>>, vector<1x32x32xf32>
    %108 = vector.shape_cast %107 : vector<1x32x32xf32> to vector<32x32xf32>
    %109 = vector.shape_cast %106 : vector<32x32xf32> to vector<1x32x32xf32>
    tpu.vector_store %arg14[%c0_51, %c0_52, %c0_53], %109 {strides = array<i32>} : memref<1x32x32xf32, #tpu.memory_space<vmem>>, vector<1x32x32xf32>,
    return
  }
  func.func @transform_0(%arg0: i32) -> (i32, i32, i32) {
    %c0_i32 = arith.constant 0 : i32
    %c0_i32_0 = arith.constant 0 : i32
    %c0_i32_1 = arith.constant 0 : i32
    return %arg0, %c0_i32, %c0_i32_0 : i32, i32, i32
  }
  func.func @transform_1(%arg0: i32) -> (i32, i32, i32) {
    %c0_i32 = arith.constant 0 : i32
    %c0_i32_0 = arith.constant 0 : i32
    %c0_i32_1 = arith.constant 0 : i32
    return %arg0, %c0_i32, %c0_i32_0 : i32, i32, i32
  }
  func.func @transform_2(%arg0: i32) -> (i32, i32, i32) {
    %c0_i32 = arith.constant 0 : i32
    %c0_i32_0 = arith.constant 0 : i32
    %c0_i32_1 = arith.constant 0 : i32
    return %arg0, %c0_i32, %c0_i32_0 : i32, i32, i32
  }
  func.func @transform_3(%arg0: i32) -> (i32, i32) {
    %c0_i32 = arith.constant 0 : i32
    %c0_i32_0 = arith.constant 0 : i32
    %c0_i32_1 = arith.constant 0 : i32
    return %c0_i32, %c0_i32_0 : i32, i32
  }
  func.func @transform_4(%arg0: i32) -> (i32, i32) {
    %c0_i32 = arith.constant 0 : i32
    %c0_i32_0 = arith.constant 0 : i32
    %c0_i32_1 = arith.constant 0 : i32
    return %c0_i32, %c0_i32_0 : i32, i32
  }
  func.func @transform_5(%arg0: i32) -> (i32, i32) {
    %c0_i32 = arith.constant 0 : i32
    %c0_i32_0 = arith.constant 0 : i32
    %c0_i32_1 = arith.constant 0 : i32
    return %c0_i32, %c0_i32_0 : i32, i32
  }
  func.func @transform_6(%arg0: i32) -> (i32, i32) {
    %c0_i32 = arith.constant 0 : i32
    %c0_i32_0 = arith.constant 0 : i32
    %c0_i32_1 = arith.constant 0 : i32
    return %c0_i32, %c0_i32_0 : i32, i32
  }
  func.func @transform_7(%arg0: i32) -> (i32, i32) {
    %c0_i32 = arith.constant 0 : i32
    %c0_i32_0 = arith.constant 0 : i32
    %c0_i32_1 = arith.constant 0 : i32
    return %c0_i32, %c0_i32_0 : i32, i32
  }
  func.func @transform_8(%arg0: i32) -> (i32, i32) {
    %c0_i32 = arith.constant 0 : i32
    %c0_i32_0 = arith.constant 0 : i32
    %c0_i32_1 = arith.constant 0 : i32
    return %c0_i32, %c0_i32_0 : i32, i32
  }
  func.func @transform_9(%arg0: i32) -> (i32, i32) {
    %c0_i32 = arith.constant 0 : i32
    %c0_i32_0 = arith.constant 0 : i32
    %c0_i32_1 = arith.constant 0 : i32
    return %c0_i32, %c0_i32_0 : i32, i32
  }
  func.func @transform_10(%arg0: i32) -> (i32, i32) {
    %c0_i32 = arith.constant 0 : i32
    %c0_i32_0 = arith.constant 0 : i32
    %c0_i32_1 = arith.constant 0 : i32
    return %c0_i32, %c0_i32_0 : i32, i32
  }
  func.func @transform_11(%arg0: i32) -> (i32, i32) {
    %c0_i32 = arith.constant 0 : i32
    %c0_i32_0 = arith.constant 0 : i32
    %c0_i32_1 = arith.constant 0 : i32
    return %c0_i32, %c0_i32_0 : i32, i32
  }
  func.func @transform_12(%arg0: i32) -> (i32, i32) {
    %c0_i32 = arith.constant 0 : i32
    %c0_i32_0 = arith.constant 0 : i32
    %c0_i32_1 = arith.constant 0 : i32
    return %c0_i32, %c0_i32_0 : i32, i32
  }
  func.func @transform_13(%arg0: i32) -> (i32, i32, i32) {
    %c0_i32 = arith.constant 0 : i32
    %c0_i32_0 = arith.constant 0 : i32
    %c0_i32_1 = arith.constant 0 : i32
    return %arg0, %c0_i32, %c0_i32_0 : i32, i32, i32
  }
}

</mosaic_0001>

<llo_original>
// kernel: mha_kqv.1
$region0: #{mha_kqv.1}
  #allocation0 [shape = 'u32[]', space=smem, size = 0x4, offset = 0x4, fixed_abs, tag = 'smem constant byte address 0x4 - core index']
  #allocation1 [shape = 'u32[144,128]{1,0:T(1,128)}', space=vmem, size = 0x12000, scoped, tag = 'internal scratch']
  %s0 = inlined_call_operand.vmem [shape: f32[2,1,32], index: 0, kind: input, shape index: {}]
  %s1 = inlined_call_operand.vmem [shape: f32[2,32,32], index: 1, kind: input, shape index: {}]
  %s2 = inlined_call_operand.vmem [shape: f32[2,32,32], index: 2, kind: input, shape index: {}]
  %s3 = inlined_call_operand.vmem [shape: f32[32,32], index: 3, kind: input, shape index: {}]
  %s4 = inlined_call_operand.vmem [shape: f32[1,32], index: 4, kind: input, shape index: {}]
  %s5 = inlined_call_operand.vmem [shape: f32[32,32], index: 5, kind: input, shape index: {}]
  %s6 = inlined_call_operand.vmem [shape: f32[1,32], index: 6, kind: input, shape index: {}]
  %s7 = inlined_call_operand.vmem [shape: f32[32,32], index: 7, kind: input, shape index: {}]
  %s8 = inlined_call_operand.vmem [shape: f32[1,32], index: 8, kind: input, shape index: {}]
  %s9 = inlined_call_operand.vmem [shape: f32[32,32], index: 9, kind: input, shape index: {}]
  %s10 = inlined_call_operand.vmem [shape: f32[1,32], index: 10, kind: input, shape index: {}]
  %s11 = inlined_call_operand.vmem [shape: f32[32,4], index: 11, kind: input, shape index: {}]
  %s12 = inlined_call_operand.vmem [shape: f32[4,32], index: 12, kind: input, shape index: {}]
  %s13 = inlined_call_operand.hbm [shape: f32[2,32,32], index: 13, kind: output, shape index: {}]
  %s14 = sld [smem:[#allocation0]]
  $region85: #{mha_kqv.1} parent=0
    _
  %s16 = ssub.s32 1, %s14
  %s17 = scalar_select 0, %s16, %s14
  $region1: #{mha_kqv.1} parent=0
    #allocation2 [shape = 'u8[32768]{0}', space=vmem, size = 0x8000, scoped, tag = 'output window, operand 0']
    #allocation3 [shape = 's32[2]{0}', space=sflag, size = 0x8, scoped, tag = 'scoped memory for mha_kqv.1']
    %18 = vsyncpa [#allocation3], 0
    %s19 = scalar_lea.sflag [#allocation3], 1
    %20 = vsyncpa %s19, 0
    loop: start=0, step=1, limit=4
    $region2: #{mha_kqv.1} parent=1 // loop_pre_header
      _
    $region3: #{mha_kqv.1} parent=1 // loop_header
      %s22 = sphi 0, %s26
      %p23 = scmp.ge.s32.totalorder %s22, 4
      %s32 = sphi 0, %s34
      %s35 = sphi 0, %s32
      %s36 = sphi 0, %s35
      %s52 = sphi 0, %s36
      %s58 = sphi 0, %s60
      %s61 = sphi 0, %s58
      %s62 = sphi 0, %s61
      %s78 = sphi 0, %s62
      %s84 = sphi 0, %s86
      %s87 = sphi 0, %s84
      %s88 = sphi 0, %s87
      %s104 = sphi 0, %s88
      %s108 = sphi 0, %s108
      %s110 = sphi 0, %s108
      %s111 = sphi 0, %s110
      %s125 = sphi 0, %s111
      %s129 = sphi 0, %s129
      %s131 = sphi 0, %s129
      %s132 = sphi 0, %s131
      %s146 = sphi 0, %s132
      %s150 = sphi 0, %s150
      %s152 = sphi 0, %s150
      %s153 = sphi 0, %s152
      %s167 = sphi 0, %s153
      %s171 = sphi 0, %s171
      %s173 = sphi 0, %s171
      %s174 = sphi 0, %s173
      %s188 = sphi 0, %s174
      %s192 = sphi 0, %s192
      %s194 = sphi 0, %s192
      %s195 = sphi 0, %s194
      %s209 = sphi 0, %s195
      %s213 = sphi 0, %s213
      %s215 = sphi 0, %s213
      %s216 = sphi 0, %s215
      %s230 = sphi 0, %s216
      %s234 = sphi 0, %s234
      %s236 = sphi 0, %s234
      %s237 = sphi 0, %s236
      %s251 = sphi 0, %s237
      %s255 = sphi 0, %s255
      %s257 = sphi 0, %s255
      %s258 = sphi 0, %s257
      %s272 = sphi 0, %s258
      %s276 = sphi 0, %s276
      %s278 = sphi 0, %s276
      %s279 = sphi 0, %s278
      %s293 = sphi 0, %s279
      %s297 = sphi 0, %s297
      %s299 = sphi 0, %s297
      %s300 = sphi 0, %s299
      %s314 = sphi 0, %s300
      %s320 = sphi 0, %s322
      %s323 = sphi 0, %s320
      %s324 = sphi 0, %s323
      %s340 = sphi 0, %s324
    $region4: #{mha_kqv.1} parent=1 // loop_header_branch
      %25 = sbr.rel (%p23) target = $region8
    $region5: #{mha_kqv.1} parent=1 // loop_body
      %s27 = ssub.s32 %s22, 1
      %s28 = ssub.s32 %s22, 2
      %s29 = sadd.s32 %s22, 1
      %s30 = ssub.s32 %s22, %s29
      %p31 = scmp.eq.s32.totalorder %s30, 0
      %s33 = sadd.s32 %s32, 1
      %s34 = scalar_select %p31, %s32, %s33
      %p37 = pneg %p31
      %p38 = scmp.eq.s32.totalorder %s22, 1
      %p39 = por %p37, %p38
      %p40 = scmp.ne.s32.totalorder %s32, %s35
      %p41 = scmp.eq.s32.totalorder %s22, 0
      %p42 = por %p40, %p41
      %p43 = scmp.ne.s32.totalorder %s32, %s35
      %p44 = scmp.eq.s32.totalorder %s27, 1
      %p45 = por %p43, %p44
      %p46 = scmp.ne.s32.totalorder %s35, %s36
      %p47 = scmp.eq.s32.totalorder %s27, 0
      %p48 = por %p46, %p47
      %p49 = scmp.ne.s32.totalorder %s35, %s36
      %p50 = scmp.eq.s32.totalorder %s28, 1
      %p51 = por %p49, %p50
      %p53 = scmp.ne.s32.totalorder %s36, %s52
      %p54 = scmp.eq.s32.totalorder %s28, 0
      %p55 = por %p53, %p54
      %s56 = ssub.s32 %s22, %s29
      %p57 = scmp.eq.s32.totalorder %s56, 0
      %s59 = sadd.s32 %s58, 1
      %s60 = scalar_select %p57, %s58, %s59
      %p63 = pneg %p57
      %p64 = scmp.eq.s32.totalorder %s22, 1
      %p65 = por %p63, %p64
      %p66 = scmp.ne.s32.totalorder %s58, %s61
      %p67 = scmp.eq.s32.totalorder %s22, 0
      %p68 = por %p66, %p67
      %p69 = scmp.ne.s32.totalorder %s58, %s61
      %p70 = scmp.eq.s32.totalorder %s27, 1
      %p71 = por %p69, %p70
      %p72 = scmp.ne.s32.totalorder %s61, %s62
      %p73 = scmp.eq.s32.totalorder %s27, 0
      %p74 = por %p72, %p73
      %p75 = scmp.ne.s32.totalorder %s61, %s62
      %p76 = scmp.eq.s32.totalorder %s28, 1
      %p77 = por %p75, %p76
      %p79 = scmp.ne.s32.totalorder %s62, %s78
      %p80 = scmp.eq.s32.totalorder %s28, 0
      %p81 = por %p79, %p80
      %s82 = ssub.s32 %s22, %s29
      %p83 = scmp.eq.s32.totalorder %s82, 0
      %s85 = sadd.s32 %s84, 1
      %s86 = scalar_select %p83, %s84, %s85
      %p89 = pneg %p83
      %p90 = scmp.eq.s32.totalorder %s22, 1
      %p91 = por %p89, %p90
      %p92 = scmp.ne.s32.totalorder %s84, %s87
      %p93 = scmp.eq.s32.totalorder %s22, 0
      %p94 = por %p92, %p93
      %p95 = scmp.ne.s32.totalorder %s84, %s87
      %p96 = scmp.eq.s32.totalorder %s27, 1
      %p97 = por %p95, %p96
      %p98 = scmp.ne.s32.totalorder %s87, %s88
      %p99 = scmp.eq.s32.totalorder %s27, 0
      %p100 = por %p98, %p99
      %p101 = scmp.ne.s32.totalorder %s87, %s88
      %p102 = scmp.eq.s32.totalorder %s28, 1
      %p103 = por %p101, %p102
      %p105 = scmp.ne.s32.totalorder %s88, %s104
      %p106 = scmp.eq.s32.totalorder %s28, 0
      %p107 = por %p105, %p106
      %s109 = sadd.s32 %s108, 1
      %p112 = scmp.eq.s32.totalorder %s22, 1
      %p113 = scmp.ne.s32.totalorder %s108, %s110
      %p114 = scmp.eq.s32.totalorder %s22, 0
      %p115 = por %p113, %p114
      %p116 = scmp.ne.s32.totalorder %s108, %s110
      %p117 = scmp.eq.s32.totalorder %s27, 1
      %p118 = por %p116, %p117
      %p119 = scmp.ne.s32.totalorder %s110, %s111
      %p120 = scmp.eq.s32.totalorder %s27, 0
      %p121 = por %p119, %p120
      %p122 = scmp.ne.s32.totalorder %s110, %s111
      %p123 = scmp.eq.s32.totalorder %s28, 1
      %p124 = por %p122, %p123
      %p126 = scmp.ne.s32.totalorder %s111, %s125
      %p127 = scmp.eq.s32.totalorder %s28, 0
      %p128 = por %p126, %p127
      %s130 = sadd.s32 %s129, 1
      %p133 = scmp.eq.s32.totalorder %s22, 1
      %p134 = scmp.ne.s32.totalorder %s129, %s131
      %p135 = scmp.eq.s32.totalorder %s22, 0
      %p136 = por %p134, %p135
      %p137 = scmp.ne.s32.totalorder %s129, %s131
      %p138 = scmp.eq.s32.totalorder %s27, 1
      %p139 = por %p137, %p138
      %p140 = scmp.ne.s32.totalorder %s131, %s132
      %p141 = scmp.eq.s32.totalorder %s27, 0
      %p142 = por %p140, %p141
      %p143 = scmp.ne.s32.totalorder %s131, %s132
      %p144 = scmp.eq.s32.totalorder %s28, 1
      %p145 = por %p143, %p144
      %p147 = scmp.ne.s32.totalorder %s132, %s146
      %p148 = scmp.eq.s32.totalorder %s28, 0
      %p149 = por %p147, %p148
      %s151 = sadd.s32 %s150, 1
      %p154 = scmp.eq.s32.totalorder %s22, 1
      %p155 = scmp.ne.s32.totalorder %s150, %s152
      %p156 = scmp.eq.s32.totalorder %s22, 0
      %p157 = por %p155, %p156
      %p158 = scmp.ne.s32.totalorder %s150, %s152
      %p159 = scmp.eq.s32.totalorder %s27, 1
      %p160 = por %p158, %p159
      %p161 = scmp.ne.s32.totalorder %s152, %s153
      %p162 = scmp.eq.s32.totalorder %s27, 0
      %p163 = por %p161, %p162
      %p164 = scmp.ne.s32.totalorder %s152, %s153
      %p165 = scmp.eq.s32.totalorder %s28, 1
      %p166 = por %p164, %p165
      %p168 = scmp.ne.s32.totalorder %s153, %s167
      %p169 = scmp.eq.s32.totalorder %s28, 0
      %p170 = por %p168, %p169
      %s172 = sadd.s32 %s171, 1
      %p175 = scmp.eq.s32.totalorder %s22, 1
      %p176 = scmp.ne.s32.totalorder %s171, %s173
      %p177 = scmp.eq.s32.totalorder %s22, 0
      %p178 = por %p176, %p177
      %p179 = scmp.ne.s32.totalorder %s171, %s173
      %p180 = scmp.eq.s32.totalorder %s27, 1
      %p181 = por %p179, %p180
      %p182 = scmp.ne.s32.totalorder %s173, %s174
      %p183 = scmp.eq.s32.totalorder %s27, 0
      %p184 = por %p182, %p183
      %p185 = scmp.ne.s32.totalorder %s173, %s174
      %p186 = scmp.eq.s32.totalorder %s28, 1
      %p187 = por %p185, %p186
      %p189 = scmp.ne.s32.totalorder %s174, %s188
      %p190 = scmp.eq.s32.totalorder %s28, 0
      %p191 = por %p189, %p190
      %s193 = sadd.s32 %s192, 1
      %p196 = scmp.eq.s32.totalorder %s22, 1
      %p197 = scmp.ne.s32.totalorder %s192, %s194
      %p198 = scmp.eq.s32.totalorder %s22, 0
      %p199 = por %p197, %p198
      %p200 = scmp.ne.s32.totalorder %s192, %s194
      %p201 = scmp.eq.s32.totalorder %s27, 1
      %p202 = por %p200, %p201
      %p203 = scmp.ne.s32.totalorder %s194, %s195
      %p204 = scmp.eq.s32.totalorder %s27, 0
      %p205 = por %p203, %p204
      %p206 = scmp.ne.s32.totalorder %s194, %s195
      %p207 = scmp.eq.s32.totalorder %s28, 1
      %p208 = por %p206, %p207
      %p210 = scmp.ne.s32.totalorder %s195, %s209
      %p211 = scmp.eq.s32.totalorder %s28, 0
      %p212 = por %p210, %p211
      %s214 = sadd.s32 %s213, 1
      %p217 = scmp.eq.s32.totalorder %s22, 1
      %p218 = scmp.ne.s32.totalorder %s213, %s215
      %p219 = scmp.eq.s32.totalorder %s22, 0
      %p220 = por %p218, %p219
      %p221 = scmp.ne.s32.totalorder %s213, %s215
      %p222 = scmp.eq.s32.totalorder %s27, 1
      %p223 = por %p221, %p222
      %p224 = scmp.ne.s32.totalorder %s215, %s216
      %p225 = scmp.eq.s32.totalorder %s27, 0
      %p226 = por %p224, %p225
      %p227 = scmp.ne.s32.totalorder %s215, %s216
      %p228 = scmp.eq.s32.totalorder %s28, 1
      %p229 = por %p227, %p228
      %p231 = scmp.ne.s32.totalorder %s216, %s230
      %p232 = scmp.eq.s32.totalorder %s28, 0
      %p233 = por %p231, %p232
      %s235 = sadd.s32 %s234, 1
      %p238 = scmp.eq.s32.totalorder %s22, 1
      %p239 = scmp.ne.s32.totalorder %s234, %s236
      %p240 = scmp.eq.s32.totalorder %s22, 0
      %p241 = por %p239, %p240
      %p242 = scmp.ne.s32.totalorder %s234, %s236
      %p243 = scmp.eq.s32.totalorder %s27, 1
      %p244 = por %p242, %p243
      %p245 = scmp.ne.s32.totalorder %s236, %s237
      %p246 = scmp.eq.s32.totalorder %s27, 0
      %p247 = por %p245, %p246
      %p248 = scmp.ne.s32.totalorder %s236, %s237
      %p249 = scmp.eq.s32.totalorder %s28, 1
      %p250 = por %p248, %p249
      %p252 = scmp.ne.s32.totalorder %s237, %s251
      %p253 = scmp.eq.s32.totalorder %s28, 0
      %p254 = por %p252, %p253
      %s256 = sadd.s32 %s255, 1
      %p259 = scmp.eq.s32.totalorder %s22, 1
      %p260 = scmp.ne.s32.totalorder %s255, %s257
      %p261 = scmp.eq.s32.totalorder %s22, 0
      %p262 = por %p260, %p261
      %p263 = scmp.ne.s32.totalorder %s255, %s257
      %p264 = scmp.eq.s32.totalorder %s27, 1
      %p265 = por %p263, %p264
      %p266 = scmp.ne.s32.totalorder %s257, %s258
      %p267 = scmp.eq.s32.totalorder %s27, 0
      %p268 = por %p266, %p267
      %p269 = scmp.ne.s32.totalorder %s257, %s258
      %p270 = scmp.eq.s32.totalorder %s28, 1
      %p271 = por %p269, %p270
      %p273 = scmp.ne.s32.totalorder %s258, %s272
      %p274 = scmp.eq.s32.totalorder %s28, 0
      %p275 = por %p273, %p274
      %s277 = sadd.s32 %s276, 1
      %p280 = scmp.eq.s32.totalorder %s22, 1
      %p281 = scmp.ne.s32.totalorder %s276, %s278
      %p282 = scmp.eq.s32.totalorder %s22, 0
      %p283 = por %p281, %p282
      %p284 = scmp.ne.s32.totalorder %s276, %s278
      %p285 = scmp.eq.s32.totalorder %s27, 1
      %p286 = por %p284, %p285
      %p287 = scmp.ne.s32.totalorder %s278, %s279
      %p288 = scmp.eq.s32.totalorder %s27, 0
      %p289 = por %p287, %p288
      %p290 = scmp.ne.s32.totalorder %s278, %s279
      %p291 = scmp.eq.s32.totalorder %s28, 1
      %p292 = por %p290, %p291
      %p294 = scmp.ne.s32.totalorder %s279, %s293
      %p295 = scmp.eq.s32.totalorder %s28, 0
      %p296 = por %p294, %p295
      %s298 = sadd.s32 %s297, 1
      %p301 = scmp.eq.s32.totalorder %s22, 1
      %p302 = scmp.ne.s32.totalorder %s297, %s299
      %p303 = scmp.eq.s32.totalorder %s22, 0
      %p304 = por %p302, %p303
      %p305 = scmp.ne.s32.totalorder %s297, %s299
      %p306 = scmp.eq.s32.totalorder %s27, 1
      %p307 = por %p305, %p306
      %p308 = scmp.ne.s32.totalorder %s299, %s300
      %p309 = scmp.eq.s32.totalorder %s27, 0
      %p310 = por %p308, %p309
      %p311 = scmp.ne.s32.totalorder %s299, %s300
      %p312 = scmp.eq.s32.totalorder %s28, 1
      %p313 = por %p311, %p312
      %p315 = scmp.ne.s32.totalorder %s300, %s314
      %p316 = scmp.eq.s32.totalorder %s28, 0
      %p317 = por %p315, %p316
      %s318 = ssub.s32 %s22, %s29
      %p319 = scmp.eq.s32.totalorder %s318, 0
      %s321 = sadd.s32 %s320, 1
      %s322 = scalar_select %p319, %s320, %s321
      %p325 = pneg %p319
      %p326 = scmp.eq.s32.totalorder %s22, 1
      %p327 = por %p325, %p326
      %p328 = scmp.ne.s32.totalorder %s320, %s323
      %p329 = scmp.eq.s32.totalorder %s22, 0
      %p330 = por %p328, %p329
      %p331 = scmp.ne.s32.totalorder %s320, %s323
      %p332 = scmp.eq.s32.totalorder %s27, 1
      %p333 = por %p331, %p332
      %p334 = scmp.ne.s32.totalorder %s323, %s324
      %p335 = scmp.eq.s32.totalorder %s27, 0
      %p336 = por %p334, %p335
      %p337 = scmp.ne.s32.totalorder %s323, %s324
      %p338 = scmp.eq.s32.totalorder %s28, 1
      %p339 = por %p337, %p338
      %p341 = scmp.ne.s32.totalorder %s324, %s340
      %p342 = scmp.eq.s32.totalorder %s28, 0
      %p343 = por %p341, %p342
      %p344 = scmp.le.s32.totalorder 1, %s22
      %p345 = scmp.lt.s32.totalorder %s22, 3
      %p346 = pnand %p344, %p345
      %p347 = pneg %p346
      // Predicated region
      $region9: #{mha_kqv.1} parent=5 // pred_check
        _
      $region10: #{mha_kqv.1} parent=5 // pred_check_branch
        %349 = sbr.rel (%p346) target = $region12
      $region11: #{mha_kqv.1} parent=5 // pred_region
        %s350 = ssub.s32 %s22, 1
        // Predicated region
        $region13: #{mha_kqv.1} parent=11 // pred_check
          %p351 = pneg %p121
        $region14: #{mha_kqv.1} parent=11 // pred_check_branch
          %353 = sbr.rel (%p351) target = $region16
        $region15: #{mha_kqv.1} parent=11 // pred_region
          _
        $region16: #{mha_kqv.1} parent=11 // pred_fallthru
          _
        // Predicated region
        $region17: #{mha_kqv.1} parent=11 // pred_check
          %p354 = pneg %p142
        $region18: #{mha_kqv.1} parent=11 // pred_check_branch
          %356 = sbr.rel (%p354) target = $region20
        $region19: #{mha_kqv.1} parent=11 // pred_region
          _
        $region20: #{mha_kqv.1} parent=11 // pred_fallthru
          _
        // Predicated region
        $region21: #{mha_kqv.1} parent=11 // pred_check
          %p357 = pneg %p163
        $region22: #{mha_kqv.1} parent=11 // pred_check_branch
          %359 = sbr.rel (%p357) target = $region24
        $region23: #{mha_kqv.1} parent=11 // pred_region
          _
        $region24: #{mha_kqv.1} parent=11 // pred_fallthru
          _
        // Predicated region
        $region25: #{mha_kqv.1} parent=11 // pred_check
          %p360 = pneg %p184
        $region26: #{mha_kqv.1} parent=11 // pred_check_branch
          %362 = sbr.rel (%p360) target = $region28
        $region27: #{mha_kqv.1} parent=11 // pred_region
          _
        $region28: #{mha_kqv.1} parent=11 // pred_fallthru
          _
        // Predicated region
        $region29: #{mha_kqv.1} parent=11 // pred_check
          %p363 = pneg %p205
        $region30: #{mha_kqv.1} parent=11 // pred_check_branch
          %365 = sbr.rel (%p363) target = $region32
        $region31: #{mha_kqv.1} parent=11 // pred_region
          _
        $region32: #{mha_kqv.1} parent=11 // pred_fallthru
          _
        // Predicated region
        $region33: #{mha_kqv.1} parent=11 // pred_check
          %p366 = pneg %p226
        $region34: #{mha_kqv.1} parent=11 // pred_check_branch
          %368 = sbr.rel (%p366) target = $region36
        $region35: #{mha_kqv.1} parent=11 // pred_region
          _
        $region36: #{mha_kqv.1} parent=11 // pred_fallthru
          _
        // Predicated region
        $region37: #{mha_kqv.1} parent=11 // pred_check
          %p369 = pneg %p247
        $region38: #{mha_kqv.1} parent=11 // pred_check_branch
          %371 = sbr.rel (%p369) target = $region40
        $region39: #{mha_kqv.1} parent=11 // pred_region
          _
        $region40: #{mha_kqv.1} parent=11 // pred_fallthru
          _
        // Predicated region
        $region41: #{mha_kqv.1} parent=11 // pred_check
          %p372 = pneg %p268
        $region42: #{mha_kqv.1} parent=11 // pred_check_branch
          %374 = sbr.rel (%p372) target = $region44
        $region43: #{mha_kqv.1} parent=11 // pred_region
          _
        $region44: #{mha_kqv.1} parent=11 // pred_fallthru
          _
        // Predicated region
        $region45: #{mha_kqv.1} parent=11 // pred_check
          %p375 = pneg %p289
        $region46: #{mha_kqv.1} parent=11 // pred_check_branch
          %377 = sbr.rel (%p375) target = $region48
        $region47: #{mha_kqv.1} parent=11 // pred_region
          _
        $region48: #{mha_kqv.1} parent=11 // pred_fallthru
          _
        // Predicated region
        $region49: #{mha_kqv.1} parent=11 // pred_check
          %p378 = pneg %p310
        $region50: #{mha_kqv.1} parent=11 // pred_check_branch
          %380 = sbr.rel (%p378) target = $region52
        $region51: #{mha_kqv.1} parent=11 // pred_region
          _
        $region52: #{mha_kqv.1} parent=11 // pred_fallthru
          _
      $region12: #{mha_kqv.1} parent=5 // pred_fallthru
        _
      %p381 = scmp.lt.s32.totalorder %s22, 2
      // Predicated region
      $region53: #{mha_kqv.1} parent=5 // pred_check
        %p382 = pneg %p381
      $region54: #{mha_kqv.1} parent=5 // pred_check_branch
        %384 = sbr.rel (%p382) target = $region56
      $region55: #{mha_kqv.1} parent=5 // pred_region
        // Predicated region
        $region57: #{mha_kqv.1} parent=55 // pred_check
          %p385 = pneg %p42
        $region58: #{mha_kqv.1} parent=55 // pred_check_branch
          %387 = sbr.rel (%p385) target = $region60
        $region59: #{mha_kqv.1} parent=55 // pred_region
          %p388 = scmp.lt.s32.totalorder %s22, 1
          %s389 = scalar_select %p388, %s22, 1
          %s390 = scalar_lea.vmem %s0, %s389
        $region60: #{mha_kqv.1} parent=55 // pred_fallthru
          _
        // Predicated region
        $region61: #{mha_kqv.1} parent=55 // pred_check
          %p391 = pneg %p68
        $region62: #{mha_kqv.1} parent=55 // pred_check_branch
          %393 = sbr.rel (%p391) target = $region64
        $region63: #{mha_kqv.1} parent=55 // pred_region
          %p394 = scmp.lt.s32.totalorder %s22, 1
          %s395 = scalar_select %p394, %s22, 1
          %s396 = smul.addr %s395, 4
          %s397 = smul.addr %s396, 8
          %s398 = scalar_lea.vmem %s1, %s397
        $region64: #{mha_kqv.1} parent=55 // pred_fallthru
          _
        // Predicated region
        $region65: #{mha_kqv.1} parent=55 // pred_check
          %p399 = pneg %p94
        $region66: #{mha_kqv.1} parent=55 // pred_check_branch
          %401 = sbr.rel (%p399) target = $region68
        $region67: #{mha_kqv.1} parent=55 // pred_region
          %p402 = scmp.lt.s32.totalorder %s22, 1
          %s403 = scalar_select %p402, %s22, 1
          %s404 = smul.addr %s403, 4
          %s405 = smul.addr %s404, 8
          %s406 = scalar_lea.vmem %s2, %s405
        $region68: #{mha_kqv.1} parent=55 // pred_fallthru
          _
      $region56: #{mha_kqv.1} parent=5 // pred_fallthru
        _
      %p407 = scmp.le.s32.totalorder 1, %s22
      %p408 = scmp.lt.s32.totalorder %s22, 3
      %p409 = pnand %p407, %p408
      %p410 = pneg %p409
      // Predicated region
      $region69: #{mha_kqv.1} parent=5 // pred_check
        _
      $region70: #{mha_kqv.1} parent=5 // pred_check_branch
        %412 = sbr.rel (%p409) target = $region72
      $region71: #{mha_kqv.1} parent=5 // pred_region
        %s413 = ssub.s32 %s22, 1
        %p414 = scmp.lt.s32.totalorder %s27, 1
        %s415 = scalar_select %p414, %s27, 1
        %s416 = scalar_lea.vmem %s0, %s415
        %p417 = pneg %p48
        %p418 = pneg %p45
        %p419 = scmp.lt.s32.totalorder %s27, 1
        %s420 = scalar_select %p419, %s27, 1
        %s421 = smul.addr %s420, 4
        %s422 = smul.addr %s421, 8
        %s423 = scalar_lea.vmem %s1, %s422
        %p424 = pneg %p74
        %p425 = pneg %p71
        %p426 = scmp.lt.s32.totalorder %s27, 1
        %s427 = scalar_select %p426, %s27, 1
        %s428 = smul.addr %s427, 4
        %s429 = smul.addr %s428, 8
        %s430 = scalar_lea.vmem %s2, %s429
        %p431 = pneg %p100
        %p432 = pneg %p97
        %p433 = pneg %p121
        %p434 = pneg %p118
        %p435 = pneg %p142
        %p436 = pneg %p139
        %p437 = pneg %p163
        %p438 = pneg %p160
        %p439 = pneg %p184
        %p440 = pneg %p181
        %p441 = pneg %p205
        %p442 = pneg %p202
        %p443 = pneg %p226
        %p444 = pneg %p223
        %p445 = pneg %p247
        %p446 = pneg %p244
        %p447 = pneg %p268
        %p448 = pneg %p265
        %p449 = pneg %p289
        %p450 = pneg %p286
        %p451 = pneg %p310
        %p452 = pneg %p307
        %p453 = pneg %p336
        %p454 = pneg %p333
        %s455 = sand.u32 %s323, 1
        %s456 = scalar_lea.sflag [#allocation3], %s455
        %s457 = sand.u32 %s323, 1
        %s458 = smul.addr %s457, 32
        %s459 = scalar_lea.vmem [#allocation2], %s458
        %p460 = scmp.lt.s32.totalorder %s27, 1
        %s461 = scalar_select %p460, %s27, 1
        %s462 = scalar_lea.vmem %s0, %s461
        %p463 = scmp.lt.s32.totalorder %s27, 1
        %s464 = scalar_select %p463, %s27, 1
        %s465 = smul.addr %s464, 4
        %s466 = smul.addr %s465, 8
        %s467 = scalar_lea.vmem %s1, %s466
        %p468 = scmp.lt.s32.totalorder %s27, 1
        %s469 = scalar_select %p468, %s27, 1
        %s470 = smul.addr %s469, 4
        %s471 = smul.addr %s470, 8
        %s472 = scalar_lea.vmem %s2, %s471
        %v473 = vld [vmem:[%s467] sm:$0xff]
        %v474 = vld [vmem:[%s467 + $0x8] sm:$0xff]
        %v475 = vld [vmem:[%s467 + $0x10] sm:$0xff]
        %v476 = vld [vmem:[%s467 + $0x18] sm:$0xff]
        %v477 = vld [vmem:[%s472] sm:$0xff]
        %v478 = vld [vmem:[%s472 + $0x8] sm:$0xff]
        %v479 = vld [vmem:[%s472 + $0x10] sm:$0xff]
        %v480 = vld [vmem:[%s472 + $0x18] sm:$0xff]
        %v481 = vld [vmem:[%s462] sm:$0x1]
        %v482 = vld [vmem:[%s5] sm:$0xff]
        %v483 = vld [vmem:[%s5 + $0x8] sm:$0xff]
        %v484 = vld [vmem:[%s5 + $0x10] sm:$0xff]
        %v485 = vld [vmem:[%s5 + $0x18] sm:$0xff]
        %v486 = vld [vmem:[%s6] sm:$0x1]
        %v488 = vlaneseq
        %v489 = vshrl.u32 %v488, 7
        %v490 = vsub.s32 0, %v489
        %v491 = vrot.slane %v486, %v490
        %vm493 = vcmask 261120
        %v495 = vsel %vm493, %v473, 0
        %v498 = vsel %vm493, %v474, 0
        %v501 = vsel %vm493, %v475, 0
        %v504 = vsel %vm493, %v476, 0
        %506 = vmatprep.subr.mxu0 0.0
        %507 = vmatpush1.msra.mxu0 0.0
        %508 = vmatprep.subr.mxu0 0.0
        %509 = vmatpush1.msra.mxu0 0.0
        %510 = vmatprep.subr.mxu0 0.0
        %511 = vmatpush1.msra.mxu0 0.0
        %512 = vmatprep.subr.mxu0 0.0
        %513 = vmatpush1.msra.mxu0 0.0
        %514 = vmatprep.subr.mxu0 0.0
        %515 = vmatpush1.msra.mxu0 0.0
        %516 = vmatprep.subr.mxu0 0.0
        %517 = vmatpush1.msra.mxu0 0.0
        %518 = vmatprep.subr.mxu0 0.0
        %519 = vmatpush1.msra.mxu0 0.0
        %520 = vmatprep.subr.mxu0 0.0
        %521 = vmatpush1.msra.mxu0 0.0
        %522 = vmatprep.subr.mxu0 0.0
        %523 = vmatpush1.msra.mxu0 0.0
        %524 = vmatprep.subr.mxu0 0.0
        %525 = vmatpush1.msra.mxu0 0.0
        %526 = vmatprep.subr.mxu0 0.0
        %527 = vmatpush1.msra.mxu0 0.0
        %528 = vmatprep.subr.mxu0 0.0
        %529 = vmatpush1.msra.mxu0 0.0
        %530 = vmatprep.subr.mxu0 0.0
        %531 = vmatpush1.msra.mxu0 %v485
        %532 = vmatprep.subr.mxu0 0.0
        %533 = vmatpush1.msra.mxu0 %v484
        %534 = vmatprep.subr.mxu0 0.0
        %535 = vmatpush1.msra.mxu0 %v483
        %536 = vmatprep.subr.mxu0 0.0
        %537 = vmatpush1.msra.mxu0 %v482
        %538 = vmatprep.subr.mxu0 0.0
        %539 = vmatpush2.msra.mxu0 0.0
        %540 = vmatprep.subr.mxu0 0.0
        %541 = vmatpush2.msra.mxu0 0.0
        %542 = vmatprep.subr.mxu0 0.0
        %543 = vmatpush2.msra.mxu0 0.0
        %544 = vmatprep.subr.mxu0 0.0
        %545 = vmatpush2.msra.mxu0 0.0
        %546 = vmatprep.subr.mxu0 0.0
        %547 = vmatpush2.msra.mxu0 0.0
        %548 = vmatprep.subr.mxu0 0.0
        %549 = vmatpush2.msra.mxu0 0.0
        %550 = vmatprep.subr.mxu0 0.0
        %551 = vmatpush2.msra.mxu0 0.0
        %552 = vmatprep.subr.mxu0 0.0
        %553 = vmatpush2.msra.mxu0 0.0
        %554 = vmatprep.subr.mxu0 0.0
        %555 = vmatpush2.msra.mxu0 0.0
        %556 = vmatprep.subr.mxu0 0.0
        %557 = vmatpush2.msra.mxu0 0.0
        %558 = vmatprep.subr.mxu0 0.0
        %559 = vmatpush2.msra.mxu0 0.0
        %560 = vmatprep.subr.mxu0 0.0
        %561 = vmatpush2.msra.mxu0 0.0
        %562 = vmatprep.subr.mxu0 0.0
        %563 = vmatpush2.msra.mxu0 0.0
        %564 = vmatprep.subr.mxu0 0.0
        %565 = vmatpush2.msra.mxu0 0.0
        %566 = vmatprep.subr.mxu0 0.0
        %567 = vmatpush2.msra.mxu0 0.0
        %568 = vmatprep.subr.mxu0 0.0
        %569 = vmatpush2.msra.mxu0 0.0
        %570 = vmatprep.mubr.f32.mxu0 0.0
        %571 = vmatmul.mubr.f32.gmra.mxu0 %v495
        %v572 = vpop.f32.mrf.mxu0
        %v573 = vadd.f32 %v491, %v572
        %v574 = vpop.f32.mrf.mxu0
        %575 = vmatprep.mubr.f32.mxu0 0.0
        %576 = vmatmul.mubr.f32.gmra.mxu0 %v498
        %v577 = vpop.f32.mrf.mxu0
        %v578 = vadd.f32 %v491, %v577
        %v579 = vpop.f32.mrf.mxu0
        %580 = vmatprep.mubr.f32.mxu0 0.0
        %581 = vmatmul.mubr.f32.gmra.mxu0 %v501
        %v582 = vpop.f32.mrf.mxu0
        %v583 = vadd.f32 %v491, %v582
        %v584 = vpop.f32.mrf.mxu0
        %585 = vmatprep.mubr.f32.mxu0 0.0
        %586 = vmatmul.mubr.f32.gmra.mxu0 %v504
        %v587 = vpop.f32.mrf.mxu0
        %v588 = vadd.f32 %v491, %v587
        %v589 = vpop.f32.mrf.mxu0
        %590 = vdwg.mxu0
        %v591 = vld [vmem:[%s7] sm:$0xff]
        %v592 = vld [vmem:[%s7 + $0x8] sm:$0xff]
        %v593 = vld [vmem:[%s7 + $0x10] sm:$0xff]
        %v594 = vld [vmem:[%s7 + $0x18] sm:$0xff]
        %v595 = vld [vmem:[%s8] sm:$0x1]
        %v597 = vlaneseq
        %v598 = vshrl.u32 %v597, 7
        %v599 = vsub.s32 0, %v598
        %v600 = vrot.slane %v595, %v599
        %v603 = vsel %vm493, %v477, 0
        %v606 = vsel %vm493, %v478, 0
        %v609 = vsel %vm493, %v479, 0
        %v612 = vsel %vm493, %v480, 0
        %614 = vmatprep.subr.mxu0 0.0
        %615 = vmatpush1.msra.mxu0 0.0
        %616 = vmatprep.subr.mxu0 0.0
        %617 = vmatpush1.msra.mxu0 0.0
        %618 = vmatprep.subr.mxu0 0.0
        %619 = vmatpush1.msra.mxu0 0.0
        %620 = vmatprep.subr.mxu0 0.0
        %621 = vmatpush1.msra.mxu0 0.0
        %622 = vmatprep.subr.mxu0 0.0
        %623 = vmatpush1.msra.mxu0 0.0
        %624 = vmatprep.subr.mxu0 0.0
        %625 = vmatpush1.msra.mxu0 0.0
        %626 = vmatprep.subr.mxu0 0.0
        %627 = vmatpush1.msra.mxu0 0.0
        %628 = vmatprep.subr.mxu0 0.0
        %629 = vmatpush1.msra.mxu0 0.0
        %630 = vmatprep.subr.mxu0 0.0
        %631 = vmatpush1.msra.mxu0 0.0
        %632 = vmatprep.subr.mxu0 0.0
        %633 = vmatpush1.msra.mxu0 0.0
        %634 = vmatprep.subr.mxu0 0.0
        %635 = vmatpush1.msra.mxu0 0.0
        %636 = vmatprep.subr.mxu0 0.0
        %637 = vmatpush1.msra.mxu0 0.0
        %638 = vmatprep.subr.mxu0 0.0
        %639 = vmatpush1.msra.mxu0 %v594
        %640 = vmatprep.subr.mxu0 0.0
        %641 = vmatpush1.msra.mxu0 %v593
        %642 = vmatprep.subr.mxu0 0.0
        %643 = vmatpush1.msra.mxu0 %v592
        %644 = vmatprep.subr.mxu0 0.0
        %645 = vmatpush1.msra.mxu0 %v591
        %646 = vmatprep.subr.mxu0 0.0
        %647 = vmatpush2.msra.mxu0 0.0
        %648 = vmatprep.subr.mxu0 0.0
        %649 = vmatpush2.msra.mxu0 0.0
        %650 = vmatprep.subr.mxu0 0.0
        %651 = vmatpush2.msra.mxu0 0.0
        %652 = vmatprep.subr.mxu0 0.0
        %653 = vmatpush2.msra.mxu0 0.0
        %654 = vmatprep.subr.mxu0 0.0
        %655 = vmatpush2.msra.mxu0 0.0
        %656 = vmatprep.subr.mxu0 0.0
        %657 = vmatpush2.msra.mxu0 0.0
        %658 = vmatprep.subr.mxu0 0.0
        %659 = vmatpush2.msra.mxu0 0.0
        %660 = vmatprep.subr.mxu0 0.0
        %661 = vmatpush2.msra.mxu0 0.0
        %662 = vmatprep.subr.mxu0 0.0
        %663 = vmatpush2.msra.mxu0 0.0
        %664 = vmatprep.subr.mxu0 0.0
        %665 = vmatpush2.msra.mxu0 0.0
        %666 = vmatprep.subr.mxu0 0.0
        %667 = vmatpush2.msra.mxu0 0.0
        %668 = vmatprep.subr.mxu0 0.0
        %669 = vmatpush2.msra.mxu0 0.0
        %670 = vmatprep.subr.mxu0 0.0
        %671 = vmatpush2.msra.mxu0 0.0
        %672 = vmatprep.subr.mxu0 0.0
        %673 = vmatpush2.msra.mxu0 0.0
        %674 = vmatprep.subr.mxu0 0.0
        %675 = vmatpush2.msra.mxu0 0.0
        %676 = vmatprep.subr.mxu0 0.0
        %677 = vmatpush2.msra.mxu0 0.0
        %678 = vmatprep.mubr.f32.mxu0 0.0
        %679 = vmatmul.mubr.f32.gmra.mxu0 %v603
        %v680 = vpop.f32.mrf.mxu0
        %v681 = vadd.f32 %v600, %v680
        %v682 = vpop.f32.mrf.mxu0
        %683 = vmatprep.mubr.f32.mxu0 0.0
        %684 = vmatmul.mubr.f32.gmra.mxu0 %v606
        %v685 = vpop.f32.mrf.mxu0
        %v686 = vadd.f32 %v600, %v685
        %v687 = vpop.f32.mrf.mxu0
        %688 = vmatprep.mubr.f32.mxu0 0.0
        %689 = vmatmul.mubr.f32.gmra.mxu0 %v609
        %v690 = vpop.f32.mrf.mxu0
        %v691 = vadd.f32 %v600, %v690
        %v692 = vpop.f32.mrf.mxu0
        %693 = vmatprep.mubr.f32.mxu0 0.0
        %694 = vmatmul.mubr.f32.gmra.mxu0 %v612
        %v695 = vpop.f32.mrf.mxu0
        %v696 = vadd.f32 %v600, %v695
        %v697 = vpop.f32.mrf.mxu0
        %698 = vdwg.mxu0
        %v699 = vld [vmem:[%s3] sm:$0xff]
        %v700 = vld [vmem:[%s3 + $0x8] sm:$0xff]
        %v701 = vld [vmem:[%s3 + $0x10] sm:$0xff]
        %v702 = vld [vmem:[%s3 + $0x18] sm:$0xff]
        %v703 = vld [vmem:[%s4] sm:$0x1]
        %v705 = vsel %vm493, %v481, 0
        %707 = vmatprep.subr.mxu0 0.0
        %708 = vmatpush1.msra.mxu0 0.0
        %709 = vmatprep.subr.mxu0 0.0
        %710 = vmatpush1.msra.mxu0 0.0
        %711 = vmatprep.subr.mxu0 0.0
        %712 = vmatpush1.msra.mxu0 0.0
        %713 = vmatprep.subr.mxu0 0.0
        %714 = vmatpush1.msra.mxu0 0.0
        %715 = vmatprep.subr.mxu0 0.0
        %716 = vmatpush1.msra.mxu0 0.0
        %717 = vmatprep.subr.mxu0 0.0
        %718 = vmatpush1.msra.mxu0 0.0
        %719 = vmatprep.subr.mxu0 0.0
        %720 = vmatpush1.msra.mxu0 0.0
        %721 = vmatprep.subr.mxu0 0.0
        %722 = vmatpush1.msra.mxu0 0.0
        %723 = vmatprep.subr.mxu0 0.0
        %724 = vmatpush1.msra.mxu0 0.0
        %725 = vmatprep.subr.mxu0 0.0
        %726 = vmatpush1.msra.mxu0 0.0
        %727 = vmatprep.subr.mxu0 0.0
        %728 = vmatpush1.msra.mxu0 0.0
        %729 = vmatprep.subr.mxu0 0.0
        %730 = vmatpush1.msra.mxu0 0.0
        %731 = vmatprep.subr.mxu0 0.0
        %732 = vmatpush1.msra.mxu0 %v702
        %733 = vmatprep.subr.mxu0 0.0
        %734 = vmatpush1.msra.mxu0 %v701
        %735 = vmatprep.subr.mxu0 0.0
        %736 = vmatpush1.msra.mxu0 %v700
        %737 = vmatprep.subr.mxu0 0.0
        %738 = vmatpush1.msra.mxu0 %v699
        %739 = vmatprep.subr.mxu0 0.0
        %740 = vmatpush2.msra.mxu0 0.0
        %741 = vmatprep.subr.mxu0 0.0
        %742 = vmatpush2.msra.mxu0 0.0
        %743 = vmatprep.subr.mxu0 0.0
        %744 = vmatpush2.msra.mxu0 0.0
        %745 = vmatprep.subr.mxu0 0.0
        %746 = vmatpush2.msra.mxu0 0.0
        %747 = vmatprep.subr.mxu0 0.0
        %748 = vmatpush2.msra.mxu0 0.0
        %749 = vmatprep.subr.mxu0 0.0
        %750 = vmatpush2.msra.mxu0 0.0
        %751 = vmatprep.subr.mxu0 0.0
        %752 = vmatpush2.msra.mxu0 0.0
        %753 = vmatprep.subr.mxu0 0.0
        %754 = vmatpush2.msra.mxu0 0.0
        %755 = vmatprep.subr.mxu0 0.0
        %756 = vmatpush2.msra.mxu0 0.0
        %757 = vmatprep.subr.mxu0 0.0
        %758 = vmatpush2.msra.mxu0 0.0
        %759 = vmatprep.subr.mxu0 0.0
        %760 = vmatpush2.msra.mxu0 0.0
        %761 = vmatprep.subr.mxu0 0.0
        %762 = vmatpush2.msra.mxu0 0.0
        %763 = vmatprep.subr.mxu0 0.0
        %764 = vmatpush2.msra.mxu0 0.0
        %765 = vmatprep.subr.mxu0 0.0
        %766 = vmatpush2.msra.mxu0 0.0
        %767 = vmatprep.subr.mxu0 0.0
        %768 = vmatpush2.msra.mxu0 0.0
        %769 = vmatprep.subr.mxu0 0.0
        %770 = vmatpush2.msra.mxu0 0.0
        %771 = vmatprep.mubr.f32.mxu0 0.0
        %772 = vmatmul.mubr.f32.gmra.mxu0 %v705
        %v773 = vpop.f32.mrf.mxu0
        %v774 = vadd.f32 %v703, %v773
        %v775 = vpop.f32.mrf.mxu0
        %776 = vdwg.mxu0
        %v777 = vmul.f32 %v774, 0.35355338
        %v778 = vld [vmem:[%s11] sm:$0xff]
        %v779 = vld [vmem:[%s11 + $0x8] sm:$0xff]
        %v780 = vld [vmem:[%s11 + $0x10] sm:$0xff]
        %v781 = vld [vmem:[%s11 + $0x18] sm:$0xff]
        %v782 = vld [vmem:[%s12] sm:$0xf]
        %v783 = vld [vmem:[%s9] sm:$0xff]
        %v784 = vld [vmem:[%s9 + $0x8] sm:$0xff]
        %v785 = vld [vmem:[%s9 + $0x10] sm:$0xff]
        %v786 = vld [vmem:[%s9 + $0x18] sm:$0xff]
        %v787 = vld [vmem:[%s10] sm:$0x1]
        %789 = vrot.lane.b32.xlu0 %v777, 8
        %v790 = vpop.permute.xlu0 %789
        %792 = vrot.lane.b32.xlu0 %v777, 16
        %v793 = vpop.permute.xlu0 %792
        %795 = vrot.lane.b32.xlu0 %v777, 24
        %v796 = vpop.permute.xlu0 %795
        %vm798 = vcmask 64512
        %v799 = vsel %vm798, %v777, %v790
        %vm800 = vcmask 130048
        %v801 = vsel %vm800, %v799, %v793
        %vm802 = vcmask 195584
        %v803 = vsel %vm802, %v801, %v796
        %v804 = vlaneseq
        %v805 = vshrl.u32 %v804, 7
        %v806 = vsub.s32 0, %v805
        %v807 = vrot.slane %v803, %v806
        %v808 = vmul.f32 %v573, %v807
        %v809 = vmul.f32 %v578, %v807
        %v810 = vmul.f32 %v583, %v807
        %v811 = vmul.f32 %v588, %v807
        %v813 = vsel %vm493, %v808, 0
        %v816 = vsel %vm493, %v809, 0
        %v819 = vsel %vm493, %v810, 0
        %v822 = vsel %vm493, %v811, 0
        %824 = vmatprep.subr.mxu0 0.0
        %825 = vmatpush1.msra.mxu0 0.0
        %826 = vmatprep.subr.mxu0 0.0
        %827 = vmatpush1.msra.mxu0 0.0
        %828 = vmatprep.subr.mxu0 0.0
        %829 = vmatpush1.msra.mxu0 0.0
        %830 = vmatprep.subr.mxu0 0.0
        %831 = vmatpush1.msra.mxu0 0.0
        %832 = vmatprep.subr.mxu0 0.0
        %833 = vmatpush1.msra.mxu0 0.0
        %834 = vmatprep.subr.mxu0 0.0
        %835 = vmatpush1.msra.mxu0 0.0
        %836 = vmatprep.subr.mxu0 0.0
        %837 = vmatpush1.msra.mxu0 0.0
        %838 = vmatprep.subr.mxu0 0.0
        %839 = vmatpush1.msra.mxu0 0.0
        %840 = vmatprep.subr.mxu0 0.0
        %841 = vmatpush1.msra.mxu0 0.0
        %842 = vmatprep.subr.mxu0 0.0
        %843 = vmatpush1.msra.mxu0 0.0
        %844 = vmatprep.subr.mxu0 0.0
        %845 = vmatpush1.msra.mxu0 0.0
        %846 = vmatprep.subr.mxu0 0.0
        %847 = vmatpush1.msra.mxu0 0.0
        %848 = vmatprep.subr.mxu0 0.0
        %849 = vmatpush1.msra.mxu0 %v781
        %850 = vmatprep.subr.mxu0 0.0
        %851 = vmatpush1.msra.mxu0 %v780
        %852 = vmatprep.subr.mxu0 0.0
        %853 = vmatpush1.msra.mxu0 %v779
        %854 = vmatprep.subr.mxu0 0.0
        %855 = vmatpush1.msra.mxu0 %v778
        %856 = vmatprep.subr.mxu0 0.0
        %857 = vmatpush2.msra.mxu0 0.0
        %858 = vmatprep.subr.mxu0 0.0
        %859 = vmatpush2.msra.mxu0 0.0
        %860 = vmatprep.subr.mxu0 0.0
        %861 = vmatpush2.msra.mxu0 0.0
        %862 = vmatprep.subr.mxu0 0.0
        %863 = vmatpush2.msra.mxu0 0.0
        %864 = vmatprep.subr.mxu0 0.0
        %865 = vmatpush2.msra.mxu0 0.0
        %866 = vmatprep.subr.mxu0 0.0
        %867 = vmatpush2.msra.mxu0 0.0
        %868 = vmatprep.subr.mxu0 0.0
        %869 = vmatpush2.msra.mxu0 0.0
        %870 = vmatprep.subr.mxu0 0.0
        %871 = vmatpush2.msra.mxu0 0.0
        %872 = vmatprep.subr.mxu0 0.0
        %873 = vmatpush2.msra.mxu0 0.0
        %874 = vmatprep.subr.mxu0 0.0
        %875 = vmatpush2.msra.mxu0 0.0
        %876 = vmatprep.subr.mxu0 0.0
        %877 = vmatpush2.msra.mxu0 0.0
        %878 = vmatprep.subr.mxu0 0.0
        %879 = vmatpush2.msra.mxu0 0.0
        %880 = vmatprep.subr.mxu0 0.0
        %881 = vmatpush2.msra.mxu0 0.0
        %882 = vmatprep.subr.mxu0 0.0
        %883 = vmatpush2.msra.mxu0 0.0
        %884 = vmatprep.subr.mxu0 0.0
        %885 = vmatpush2.msra.mxu0 0.0
        %886 = vmatprep.subr.mxu0 0.0
        %887 = vmatpush2.msra.mxu0 0.0
        %888 = vmatprep.mubr.f32.mxu0 0.0
        %889 = vmatmul.mubr.f32.gmra.mxu0 %v813
        %v890 = vpop.f32.mrf.mxu0
        %v891 = vadd.f32 0.0, %v890
        %v892 = vpop.f32.mrf.mxu0
        %893 = vmatprep.mubr.f32.mxu0 0.0
        %894 = vmatmul.mubr.f32.gmra.mxu0 %v816
        %v895 = vpop.f32.mrf.mxu0
        %v896 = vadd.f32 0.0, %v895
        %v897 = vpop.f32.mrf.mxu0
        %898 = vmatprep.mubr.f32.mxu0 0.0
        %899 = vmatmul.mubr.f32.gmra.mxu0 %v819
        %v900 = vpop.f32.mrf.mxu0
        %v901 = vadd.f32 0.0, %v900
        %v902 = vpop.f32.mrf.mxu0
        %903 = vmatprep.mubr.f32.mxu0 0.0
        %904 = vmatmul.mubr.f32.gmra.mxu0 %v822
        %v905 = vpop.f32.mrf.mxu0
        %v906 = vadd.f32 0.0, %v905
        %v907 = vpop.f32.mrf.mxu0
        %908 = vdwg.mxu0
        %vm909 = vcmask 31744
        %v910 = vsel %vm909, %v891, -inf
        %911 = vmax.xlane.f32.xlu0 %v910
        %v912 = vpop.xlane.xlu0 %911
        %v913 = vsel %vm909, %v896, -inf
        %914 = vmax.xlane.f32.xlu0 %v913
        %v915 = vpop.xlane.xlu0 %914
        %v916 = vsel %vm909, %v901, -inf
        %917 = vmax.xlane.f32.xlu0 %v916
        %v918 = vpop.xlane.xlu0 %917
        %v919 = vsel %vm909, %v906, -inf
        %920 = vmax.xlane.f32.xlu0 %v919
        %v921 = vpop.xlane.xlu0 %920
        %v922 = vsub.f32 %v891, %v912
        %v923 = vsub.f32 %v896, %v915
        %v924 = vsub.f32 %v901, %v918
        %v925 = vsub.f32 %v906, %v921
        %v926 = vmul.f32 %v922, 1.442695
        %v927 = vpow.pop %v926
        %v928 = vmul.f32 %v923, 1.442695
        %v929 = vpow.pop %v928
        %v930 = vmul.f32 %v924, 1.442695
        %v931 = vpow.pop %v930
        %v932 = vmul.f32 %v925, 1.442695
        %v933 = vpow.pop %v932
        %v934 = vsel %vm909, %v927, 0.0
        %935 = vadd.xlane.f32.xlu0 %v934
        %v936 = vpop.xlane.xlu0 %935
        %v937 = vsel %vm909, %v929, 0.0
        %938 = vadd.xlane.f32.xlu0 %v937
        %v939 = vpop.xlane.xlu0 %938
        %v940 = vsel %vm909, %v931, 0.0
        %941 = vadd.xlane.f32.xlu0 %v940
        %v942 = vpop.xlane.xlu0 %941
        %v943 = vsel %vm909, %v933, 0.0
        %944 = vadd.xlane.f32.xlu0 %v943
        %v945 = vpop.xlane.xlu0 %944
        %v946 = vrcp.pop %v936
        %v947 = vmul.f32 %v927, %v946
        %v948 = vrcp.pop %v939
        %v949 = vmul.f32 %v929, %v948
        %v950 = vrcp.pop %v942
        %v951 = vmul.f32 %v931, %v950
        %v952 = vrcp.pop %v945
        %v953 = vmul.f32 %v933, %v952
        %v955 = vsel %vm909, %v947, 0
        %v958 = vsel %vm909, %v949, 0
        %v961 = vsel %vm909, %v951, 0
        %v964 = vsel %vm909, %v953, 0
        %vm966 = vcmask 1043456
        %v968 = vsel %vm966, %v782, 0
        %970 = vmatprep.subr.mxu0 0.0
        %971 = vmatpush1.msra.mxu0 0.0
        %972 = vmatprep.subr.mxu0 0.0
        %973 = vmatpush1.msra.mxu0 0.0
        %974 = vmatprep.subr.mxu0 0.0
        %975 = vmatpush1.msra.mxu0 0.0
        %976 = vmatprep.subr.mxu0 0.0
        %977 = vmatpush1.msra.mxu0 0.0
        %978 = vmatprep.subr.mxu0 0.0
        %979 = vmatpush1.msra.mxu0 0.0
        %980 = vmatprep.subr.mxu0 0.0
        %981 = vmatpush1.msra.mxu0 0.0
        %982 = vmatprep.subr.mxu0 0.0
        %983 = vmatpush1.msra.mxu0 0.0
        %984 = vmatprep.subr.mxu0 0.0
        %985 = vmatpush1.msra.mxu0 0.0
        %986 = vmatprep.subr.mxu0 0.0
        %987 = vmatpush1.msra.mxu0 0.0
        %988 = vmatprep.subr.mxu0 0.0
        %989 = vmatpush1.msra.mxu0 0.0
        %990 = vmatprep.subr.mxu0 0.0
        %991 = vmatpush1.msra.mxu0 0.0
        %992 = vmatprep.subr.mxu0 0.0
        %993 = vmatpush1.msra.mxu0 0.0
        %994 = vmatprep.subr.mxu0 0.0
        %995 = vmatpush1.msra.mxu0 0.0
        %996 = vmatprep.subr.mxu0 0.0
        %997 = vmatpush1.msra.mxu0 0.0
        %998 = vmatprep.subr.mxu0 0.0
        %999 = vmatpush1.msra.mxu0 0.0
        %1000 = vmatprep.subr.mxu0 0.0
        %1001 = vmatpush1.msra.mxu0 %v968
        %1002 = vmatprep.subr.mxu0 0.0
        %1003 = vmatpush2.msra.mxu0 0.0
        %1004 = vmatprep.subr.mxu0 0.0
        %1005 = vmatpush2.msra.mxu0 0.0
        %1006 = vmatprep.subr.mxu0 0.0
        %1007 = vmatpush2.msra.mxu0 0.0
        %1008 = vmatprep.subr.mxu0 0.0
        %1009 = vmatpush2.msra.mxu0 0.0
        %1010 = vmatprep.subr.mxu0 0.0
        %1011 = vmatpush2.msra.mxu0 0.0
        %1012 = vmatprep.subr.mxu0 0.0
        %1013 = vmatpush2.msra.mxu0 0.0
        %1014 = vmatprep.subr.mxu0 0.0
        %1015 = vmatpush2.msra.mxu0 0.0
        %1016 = vmatprep.subr.mxu0 0.0
        %1017 = vmatpush2.msra.mxu0 0.0
        %1018 = vmatprep.subr.mxu0 0.0
        %1019 = vmatpush2.msra.mxu0 0.0
        %1020 = vmatprep.subr.mxu0 0.0
        %1021 = vmatpush2.msra.mxu0 0.0
        %1022 = vmatprep.subr.mxu0 0.0
        %1023 = vmatpush2.msra.mxu0 0.0
        %1024 = vmatprep.subr.mxu0 0.0
        %1025 = vmatpush2.msra.mxu0 0.0
        %1026 = vmatprep.subr.mxu0 0.0
        %1027 = vmatpush2.msra.mxu0 0.0
        %1028 = vmatprep.subr.mxu0 0.0
        %1029 = vmatpush2.msra.mxu0 0.0
        %1030 = vmatprep.subr.mxu0 0.0
        %1031 = vmatpush2.msra.mxu0 0.0
        %1032 = vmatprep.subr.mxu0 0.0
        %1033 = vmatpush2.msra.mxu0 0.0
        %1034 = vmatprep.mubr.f32.mxu0 0.0
        %1035 = vmatmul.mubr.f32.gmra.mxu0 %v955
        %v1036 = vpop.f32.mrf.mxu0
        %v1037 = vadd.f32 0.0, %v1036
        %v1038 = vpop.f32.mrf.mxu0
        %1039 = vmatprep.mubr.f32.mxu0 0.0
        %1040 = vmatmul.mubr.f32.gmra.mxu0 %v958
        %v1041 = vpop.f32.mrf.mxu0
        %v1042 = vadd.f32 0.0, %v1041
        %v1043 = vpop.f32.mrf.mxu0
        %1044 = vmatprep.mubr.f32.mxu0 0.0
        %1045 = vmatmul.mubr.f32.gmra.mxu0 %v961
        %v1046 = vpop.f32.mrf.mxu0
        %v1047 = vadd.f32 0.0, %v1046
        %v1048 = vpop.f32.mrf.mxu0
        %1049 = vmatprep.mubr.f32.mxu0 0.0
        %1050 = vmatmul.mubr.f32.gmra.mxu0 %v964
        %v1051 = vpop.f32.mrf.mxu0
        %v1052 = vadd.f32 0.0, %v1051
        %v1053 = vpop.f32.mrf.mxu0
        %1054 = vdwg.mxu0
        %v1055 = vmul.f32 %v1037, %v681
        %v1056 = vmul.f32 %v1042, %v686
        %v1057 = vmul.f32 %v1047, %v691
        %v1058 = vmul.f32 %v1052, %v696
        %1059 = vrot.lane.b32.xlu0 %v777, 120
        %v1060 = vpop.permute.xlu0 %1059
        %v1062 = vsel %vm798, %v1060, %v777
        %v1063 = vsel %vm800, %v1062, %v790
        %v1064 = vsel %vm802, %v1063, %v793
        %v1065 = vlaneseq
        %v1066 = vshrl.u32 %v1065, 7
        %v1067 = vsub.s32 0, %v1066
        %v1068 = vrot.slane %v1064, %v1067
        %v1069 = vmul.f32 %v573, %v1068
        %v1070 = vmul.f32 %v578, %v1068
        %v1071 = vmul.f32 %v583, %v1068
        %v1072 = vmul.f32 %v588, %v1068
        %v1074 = vsel %vm493, %v1069, 0
        %v1077 = vsel %vm493, %v1070, 0
        %v1080 = vsel %vm493, %v1071, 0
        %v1083 = vsel %vm493, %v1072, 0
        %1085 = vmatprep.subr.mxu0 0.0
        %1086 = vmatpush1.msra.mxu0 0.0
        %1087 = vmatprep.subr.mxu0 0.0
        %1088 = vmatpush1.msra.mxu0 0.0
        %1089 = vmatprep.subr.mxu0 0.0
        %1090 = vmatpush1.msra.mxu0 0.0
        %1091 = vmatprep.subr.mxu0 0.0
        %1092 = vmatpush1.msra.mxu0 0.0
        %1093 = vmatprep.subr.mxu0 0.0
        %1094 = vmatpush1.msra.mxu0 0.0
        %1095 = vmatprep.subr.mxu0 0.0
        %1096 = vmatpush1.msra.mxu0 0.0
        %1097 = vmatprep.subr.mxu0 0.0
        %1098 = vmatpush1.msra.mxu0 0.0
        %1099 = vmatprep.subr.mxu0 0.0
        %1100 = vmatpush1.msra.mxu0 0.0
        %1101 = vmatprep.subr.mxu0 0.0
        %1102 = vmatpush1.msra.mxu0 0.0
        %1103 = vmatprep.subr.mxu0 0.0
        %1104 = vmatpush1.msra.mxu0 0.0
        %1105 = vmatprep.subr.mxu0 0.0
        %1106 = vmatpush1.msra.mxu0 0.0
        %1107 = vmatprep.subr.mxu0 0.0
        %1108 = vmatpush1.msra.mxu0 0.0
        %1109 = vmatprep.subr.mxu0 0.0
        %1110 = vmatpush1.msra.mxu0 %v781
        %1111 = vmatprep.subr.mxu0 0.0
        %1112 = vmatpush1.msra.mxu0 %v780
        %1113 = vmatprep.subr.mxu0 0.0
        %1114 = vmatpush1.msra.mxu0 %v779
        %1115 = vmatprep.subr.mxu0 0.0
        %1116 = vmatpush1.msra.mxu0 %v778
        %1117 = vmatprep.subr.mxu0 0.0
        %1118 = vmatpush2.msra.mxu0 0.0
        %1119 = vmatprep.subr.mxu0 0.0
        %1120 = vmatpush2.msra.mxu0 0.0
        %1121 = vmatprep.subr.mxu0 0.0
        %1122 = vmatpush2.msra.mxu0 0.0
        %1123 = vmatprep.subr.mxu0 0.0
        %1124 = vmatpush2.msra.mxu0 0.0
        %1125 = vmatprep.subr.mxu0 0.0
        %1126 = vmatpush2.msra.mxu0 0.0
        %1127 = vmatprep.subr.mxu0 0.0
        %1128 = vmatpush2.msra.mxu0 0.0
        %1129 = vmatprep.subr.mxu0 0.0
        %1130 = vmatpush2.msra.mxu0 0.0
        %1131 = vmatprep.subr.mxu0 0.0
        %1132 = vmatpush2.msra.mxu0 0.0
        %1133 = vmatprep.subr.mxu0 0.0
        %1134 = vmatpush2.msra.mxu0 0.0
        %1135 = vmatprep.subr.mxu0 0.0
        %1136 = vmatpush2.msra.mxu0 0.0
        %1137 = vmatprep.subr.mxu0 0.0
        %1138 = vmatpush2.msra.mxu0 0.0
        %1139 = vmatprep.subr.mxu0 0.0
        %1140 = vmatpush2.msra.mxu0 0.0
        %1141 = vmatprep.subr.mxu0 0.0
        %1142 = vmatpush2.msra.mxu0 0.0
        %1143 = vmatprep.subr.mxu0 0.0
        %1144 = vmatpush2.msra.mxu0 0.0
        %1145 = vmatprep.subr.mxu0 0.0
        %1146 = vmatpush2.msra.mxu0 0.0
        %1147 = vmatprep.subr.mxu0 0.0
        %1148 = vmatpush2.msra.mxu0 0.0
        %1149 = vmatprep.mubr.f32.mxu0 0.0
        %1150 = vmatmul.mubr.f32.gmra.mxu0 %v1074
        %v1151 = vpop.f32.mrf.mxu0
        %v1152 = vadd.f32 0.0, %v1151
        %v1153 = vpop.f32.mrf.mxu0
        %1154 = vmatprep.mubr.f32.mxu0 0.0
        %1155 = vmatmul.mubr.f32.gmra.mxu0 %v1077
        %v1156 = vpop.f32.mrf.mxu0
        %v1157 = vadd.f32 0.0, %v1156
        %v1158 = vpop.f32.mrf.mxu0
        %1159 = vmatprep.mubr.f32.mxu0 0.0
        %1160 = vmatmul.mubr.f32.gmra.mxu0 %v1080
        %v1161 = vpop.f32.mrf.mxu0
        %v1162 = vadd.f32 0.0, %v1161
        %v1163 = vpop.f32.mrf.mxu0
        %1164 = vmatprep.mubr.f32.mxu0 0.0
        %1165 = vmatmul.mubr.f32.gmra.mxu0 %v1083
        %v1166 = vpop.f32.mrf.mxu0
        %v1167 = vadd.f32 0.0, %v1166
        %v1168 = vpop.f32.mrf.mxu0
        %1169 = vdwg.mxu0
        %v1170 = vsel %vm909, %v1152, -inf
        %1171 = vmax.xlane.f32.xlu0 %v1170
        %v1172 = vpop.xlane.xlu0 %1171
        %v1173 = vsel %vm909, %v1157, -inf
        %1174 = vmax.xlane.f32.xlu0 %v1173
        %v1175 = vpop.xlane.xlu0 %1174
        %v1176 = vsel %vm909, %v1162, -inf
        %1177 = vmax.xlane.f32.xlu0 %v1176
        %v1178 = vpop.xlane.xlu0 %1177
        %v1179 = vsel %vm909, %v1167, -inf
        %1180 = vmax.xlane.f32.xlu0 %v1179
        %v1181 = vpop.xlane.xlu0 %1180
        %v1182 = vsub.f32 %v1152, %v1172
        %v1183 = vsub.f32 %v1157, %v1175
        %v1184 = vsub.f32 %v1162, %v1178
        %v1185 = vsub.f32 %v1167, %v1181
        %v1186 = vmul.f32 %v1182, 1.442695
        %v1187 = vpow.pop %v1186
        %v1188 = vmul.f32 %v1183, 1.442695
        %v1189 = vpow.pop %v1188
        %v1190 = vmul.f32 %v1184, 1.442695
        %v1191 = vpow.pop %v1190
        %v1192 = vmul.f32 %v1185, 1.442695
        %v1193 = vpow.pop %v1192
        %v1194 = vsel %vm909, %v1187, 0.0
        %1195 = vadd.xlane.f32.xlu0 %v1194
        %v1196 = vpop.xlane.xlu0 %1195
        %v1197 = vsel %vm909, %v1189, 0.0
        %1198 = vadd.xlane.f32.xlu0 %v1197
        %v1199 = vpop.xlane.xlu0 %1198
        %v1200 = vsel %vm909, %v1191, 0.0
        %1201 = vadd.xlane.f32.xlu0 %v1200
        %v1202 = vpop.xlane.xlu0 %1201
        %v1203 = vsel %vm909, %v1193, 0.0
        %1204 = vadd.xlane.f32.xlu0 %v1203
        %v1205 = vpop.xlane.xlu0 %1204
        %v1206 = vrcp.pop %v1196
        %v1207 = vmul.f32 %v1187, %v1206
        %v1208 = vrcp.pop %v1199
        %v1209 = vmul.f32 %v1189, %v1208
        %v1210 = vrcp.pop %v1202
        %v1211 = vmul.f32 %v1191, %v1210
        %v1212 = vrcp.pop %v1205
        %v1213 = vmul.f32 %v1193, %v1212
        %v1215 = vsel %vm909, %v1207, 0
        %v1218 = vsel %vm909, %v1209, 0
        %v1221 = vsel %vm909, %v1211, 0
        %v1224 = vsel %vm909, %v1213, 0
        %1226 = vmatprep.subr.mxu0 0.0
        %1227 = vmatpush1.msra.mxu0 0.0
        %1228 = vmatprep.subr.mxu0 0.0
        %1229 = vmatpush1.msra.mxu0 0.0
        %1230 = vmatprep.subr.mxu0 0.0
        %1231 = vmatpush1.msra.mxu0 0.0
        %1232 = vmatprep.subr.mxu0 0.0
        %1233 = vmatpush1.msra.mxu0 0.0
        %1234 = vmatprep.subr.mxu0 0.0
        %1235 = vmatpush1.msra.mxu0 0.0
        %1236 = vmatprep.subr.mxu0 0.0
        %1237 = vmatpush1.msra.mxu0 0.0
        %1238 = vmatprep.subr.mxu0 0.0
        %1239 = vmatpush1.msra.mxu0 0.0
        %1240 = vmatprep.subr.mxu0 0.0
        %1241 = vmatpush1.msra.mxu0 0.0
        %1242 = vmatprep.subr.mxu0 0.0
        %1243 = vmatpush1.msra.mxu0 0.0
        %1244 = vmatprep.subr.mxu0 0.0
        %1245 = vmatpush1.msra.mxu0 0.0
        %1246 = vmatprep.subr.mxu0 0.0
        %1247 = vmatpush1.msra.mxu0 0.0
        %1248 = vmatprep.subr.mxu0 0.0
        %1249 = vmatpush1.msra.mxu0 0.0
        %1250 = vmatprep.subr.mxu0 0.0
        %1251 = vmatpush1.msra.mxu0 0.0
        %1252 = vmatprep.subr.mxu0 0.0
        %1253 = vmatpush1.msra.mxu0 0.0
        %1254 = vmatprep.subr.mxu0 0.0
        %1255 = vmatpush1.msra.mxu0 0.0
        %1256 = vmatprep.subr.mxu0 0.0
        %1257 = vmatpush1.msra.mxu0 %v968
        %1258 = vmatprep.subr.mxu0 0.0
        %1259 = vmatpush2.msra.mxu0 0.0
        %1260 = vmatprep.subr.mxu0 0.0
        %1261 = vmatpush2.msra.mxu0 0.0
        %1262 = vmatprep.subr.mxu0 0.0
        %1263 = vmatpush2.msra.mxu0 0.0
        %1264 = vmatprep.subr.mxu0 0.0
        %1265 = vmatpush2.msra.mxu0 0.0
        %1266 = vmatprep.subr.mxu0 0.0
        %1267 = vmatpush2.msra.mxu0 0.0
        %1268 = vmatprep.subr.mxu0 0.0
        %1269 = vmatpush2.msra.mxu0 0.0
        %1270 = vmatprep.subr.mxu0 0.0
        %1271 = vmatpush2.msra.mxu0 0.0
        %1272 = vmatprep.subr.mxu0 0.0
        %1273 = vmatpush2.msra.mxu0 0.0
        %1274 = vmatprep.subr.mxu0 0.0
        %1275 = vmatpush2.msra.mxu0 0.0
        %1276 = vmatprep.subr.mxu0 0.0
        %1277 = vmatpush2.msra.mxu0 0.0
        %1278 = vmatprep.subr.mxu0 0.0
        %1279 = vmatpush2.msra.mxu0 0.0
        %1280 = vmatprep.subr.mxu0 0.0
        %1281 = vmatpush2.msra.mxu0 0.0
        %1282 = vmatprep.subr.mxu0 0.0
        %1283 = vmatpush2.msra.mxu0 0.0
        %1284 = vmatprep.subr.mxu0 0.0
        %1285 = vmatpush2.msra.mxu0 0.0
        %1286 = vmatprep.subr.mxu0 0.0
        %1287 = vmatpush2.msra.mxu0 0.0
        %1288 = vmatprep.subr.mxu0 0.0
        %1289 = vmatpush2.msra.mxu0 0.0
        %1290 = vmatprep.mubr.f32.mxu0 0.0
        %1291 = vmatmul.mubr.f32.gmra.mxu0 %v1215
        %v1292 = vpop.f32.mrf.mxu0
        %v1293 = vadd.f32 0.0, %v1292
        %v1294 = vpop.f32.mrf.mxu0
        %1295 = vmatprep.mubr.f32.mxu0 0.0
        %1296 = vmatmul.mubr.f32.gmra.mxu0 %v1218
        %v1297 = vpop.f32.mrf.mxu0
        %v1298 = vadd.f32 0.0, %v1297
        %v1299 = vpop.f32.mrf.mxu0
        %1300 = vmatprep.mubr.f32.mxu0 0.0
        %1301 = vmatmul.mubr.f32.gmra.mxu0 %v1221
        %v1302 = vpop.f32.mrf.mxu0
        %v1303 = vadd.f32 0.0, %v1302
        %v1304 = vpop.f32.mrf.mxu0
        %1305 = vmatprep.mubr.f32.mxu0 0.0
        %1306 = vmatmul.mubr.f32.gmra.mxu0 %v1224
        %v1307 = vpop.f32.mrf.mxu0
        %v1308 = vadd.f32 0.0, %v1307
        %v1309 = vpop.f32.mrf.mxu0
        %1310 = vdwg.mxu0
        %v1311 = vmul.f32 %v1293, %v681
        %v1312 = vmul.f32 %v1298, %v686
        %v1313 = vmul.f32 %v1303, %v691
        %v1314 = vmul.f32 %v1308, %v696
        %v1316 = vsel %vm493, %v1311, 0
        %v1319 = vsel %vm493, %v1312, 0
        %v1322 = vsel %vm493, %v1313, 0
        %v1325 = vsel %vm493, %v1314, 0
        %1327 = vmatprep.subr.mxu0 0.0
        %1328 = vmatpush1.msra.mxu0 0.0
        %1329 = vmatprep.subr.mxu0 0.0
        %1330 = vmatpush1.msra.mxu0 0.0
        %1331 = vmatprep.subr.mxu0 0.0
        %1332 = vmatpush1.msra.mxu0 0.0
        %1333 = vmatprep.subr.mxu0 0.0
        %1334 = vmatpush1.msra.mxu0 0.0
        %1335 = vmatprep.subr.mxu0 0.0
        %1336 = vmatpush1.msra.mxu0 0.0
        %1337 = vmatprep.subr.mxu0 0.0
        %1338 = vmatpush1.msra.mxu0 0.0
        %1339 = vmatprep.subr.mxu0 0.0
        %1340 = vmatpush1.msra.mxu0 0.0
        %1341 = vmatprep.subr.mxu0 0.0
        %1342 = vmatpush1.msra.mxu0 0.0
        %1343 = vmatprep.subr.mxu0 0.0
        %1344 = vmatpush1.msra.mxu0 0.0
        %1345 = vmatprep.subr.mxu0 0.0
        %1346 = vmatpush1.msra.mxu0 0.0
        %1347 = vmatprep.subr.mxu0 0.0
        %1348 = vmatpush1.msra.mxu0 0.0
        %1349 = vmatprep.subr.mxu0 0.0
        %1350 = vmatpush1.msra.mxu0 0.0
        %1351 = vmatprep.subr.mxu0 0.0
        %1352 = vmatpush1.msra.mxu0 %v784
        %1353 = vmatprep.subr.mxu0 0.0
        %1354 = vmatpush1.msra.mxu0 %v784
        %1355 = vmatprep.subr.mxu0 0.0
        %1356 = vmatpush1.msra.mxu0 %v784
        %1357 = vmatprep.subr.mxu0 0.0
        %1358 = vmatpush1.msra.mxu0 %v784
        %1359 = vmatprep.subr.mxu0 0.0
        %1360 = vmatpush2.msra.mxu0 0.0
        %1361 = vmatprep.subr.mxu0 0.0
        %1362 = vmatpush2.msra.mxu0 0.0
        %1363 = vmatprep.subr.mxu0 0.0
        %1364 = vmatpush2.msra.mxu0 0.0
        %1365 = vmatprep.subr.mxu0 0.0
        %1366 = vmatpush2.msra.mxu0 0.0
        %1367 = vmatprep.subr.mxu0 0.0
        %1368 = vmatpush2.msra.mxu0 0.0
        %1369 = vmatprep.subr.mxu0 0.0
        %1370 = vmatpush2.msra.mxu0 0.0
        %1371 = vmatprep.subr.mxu0 0.0
        %1372 = vmatpush2.msra.mxu0 0.0
        %1373 = vmatprep.subr.mxu0 0.0
        %1374 = vmatpush2.msra.mxu0 0.0
        %1375 = vmatprep.subr.mxu0 0.0
        %1376 = vmatpush2.msra.mxu0 0.0
        %1377 = vmatprep.subr.mxu0 0.0
        %1378 = vmatpush2.msra.mxu0 0.0
        %1379 = vmatprep.subr.mxu0 0.0
        %1380 = vmatpush2.msra.mxu0 0.0
        %1381 = vmatprep.subr.mxu0 0.0
        %1382 = vmatpush2.msra.mxu0 0.0
        %1383 = vmatprep.subr.mxu0 0.0
        %1384 = vmatpush2.msra.mxu0 0.0
        %1385 = vmatprep.subr.mxu0 0.0
        %1386 = vmatpush2.msra.mxu0 0.0
        %1387 = vmatprep.subr.mxu0 0.0
        %1388 = vmatpush2.msra.mxu0 0.0
        %1389 = vmatprep.subr.mxu0 0.0
        %1390 = vmatpush2.msra.mxu0 0.0
        %1391 = vmatprep.mubr.f32.mxu0 0.0
        %1392 = vmatmul.mubr.f32.gmra.mxu0 %v1316
        %v1393 = vpop.f32.mrf.mxu0
        %v1394 = vadd.f32 0.0, %v1393
        %v1395 = vpop.f32.mrf.mxu0
        %1396 = vmatprep.mubr.f32.mxu0 0.0
        %1397 = vmatmul.mubr.f32.gmra.mxu0 %v1319
        %v1398 = vpop.f32.mrf.mxu0
        %v1399 = vadd.f32 0.0, %v1398
        %v1400 = vpop.f32.mrf.mxu0
        %1401 = vmatprep.mubr.f32.mxu0 0.0
        %1402 = vmatmul.mubr.f32.gmra.mxu0 %v1322
        %v1403 = vpop.f32.mrf.mxu0
        %v1404 = vadd.f32 0.0, %v1403
        %v1405 = vpop.f32.mrf.mxu0
        %1406 = vmatprep.mubr.f32.mxu0 0.0
        %1407 = vmatmul.mubr.f32.gmra.mxu0 %v1325
        %v1408 = vpop.f32.mrf.mxu0
        %v1409 = vadd.f32 0.0, %v1408
        %v1410 = vpop.f32.mrf.mxu0
        %1411 = vdwg.mxu0
        %v1413 = vsel %vm493, %v1055, 0
        %v1416 = vsel %vm493, %v1056, 0
        %v1419 = vsel %vm493, %v1057, 0
        %v1422 = vsel %vm493, %v1058, 0
        %1424 = vmatprep.subr.mxu0 0.0
        %1425 = vmatpush1.msra.mxu0 0.0
        %1426 = vmatprep.subr.mxu0 0.0
        %1427 = vmatpush1.msra.mxu0 0.0
        %1428 = vmatprep.subr.mxu0 0.0
        %1429 = vmatpush1.msra.mxu0 0.0
        %1430 = vmatprep.subr.mxu0 0.0
        %1431 = vmatpush1.msra.mxu0 0.0
        %1432 = vmatprep.subr.mxu0 0.0
        %1433 = vmatpush1.msra.mxu0 0.0
        %1434 = vmatprep.subr.mxu0 0.0
        %1435 = vmatpush1.msra.mxu0 0.0
        %1436 = vmatprep.subr.mxu0 0.0
        %1437 = vmatpush1.msra.mxu0 0.0
        %1438 = vmatprep.subr.mxu0 0.0
        %1439 = vmatpush1.msra.mxu0 0.0
        %1440 = vmatprep.subr.mxu0 0.0
        %1441 = vmatpush1.msra.mxu0 0.0
        %1442 = vmatprep.subr.mxu0 0.0
        %1443 = vmatpush1.msra.mxu0 0.0
        %1444 = vmatprep.subr.mxu0 0.0
        %1445 = vmatpush1.msra.mxu0 0.0
        %1446 = vmatprep.subr.mxu0 0.0
        %1447 = vmatpush1.msra.mxu0 0.0
        %1448 = vmatprep.subr.mxu0 0.0
        %1449 = vmatpush1.msra.mxu0 %v783
        %1450 = vmatprep.subr.mxu0 0.0
        %1451 = vmatpush1.msra.mxu0 %v783
        %1452 = vmatprep.subr.mxu0 0.0
        %1453 = vmatpush1.msra.mxu0 %v783
        %1454 = vmatprep.subr.mxu0 0.0
        %1455 = vmatpush1.msra.mxu0 %v783
        %1456 = vmatprep.subr.mxu0 0.0
        %1457 = vmatpush2.msra.mxu0 0.0
        %1458 = vmatprep.subr.mxu0 0.0
        %1459 = vmatpush2.msra.mxu0 0.0
        %1460 = vmatprep.subr.mxu0 0.0
        %1461 = vmatpush2.msra.mxu0 0.0
        %1462 = vmatprep.subr.mxu0 0.0
        %1463 = vmatpush2.msra.mxu0 0.0
        %1464 = vmatprep.subr.mxu0 0.0
        %1465 = vmatpush2.msra.mxu0 0.0
        %1466 = vmatprep.subr.mxu0 0.0
        %1467 = vmatpush2.msra.mxu0 0.0
        %1468 = vmatprep.subr.mxu0 0.0
        %1469 = vmatpush2.msra.mxu0 0.0
        %1470 = vmatprep.subr.mxu0 0.0
        %1471 = vmatpush2.msra.mxu0 0.0
        %1472 = vmatprep.subr.mxu0 0.0
        %1473 = vmatpush2.msra.mxu0 0.0
        %1474 = vmatprep.subr.mxu0 0.0
        %1475 = vmatpush2.msra.mxu0 0.0
        %1476 = vmatprep.subr.mxu0 0.0
        %1477 = vmatpush2.msra.mxu0 0.0
        %1478 = vmatprep.subr.mxu0 0.0
        %1479 = vmatpush2.msra.mxu0 0.0
        %1480 = vmatprep.subr.mxu0 0.0
        %1481 = vmatpush2.msra.mxu0 0.0
        %1482 = vmatprep.subr.mxu0 0.0
        %1483 = vmatpush2.msra.mxu0 0.0
        %1484 = vmatprep.subr.mxu0 0.0
        %1485 = vmatpush2.msra.mxu0 0.0
        %1486 = vmatprep.subr.mxu0 0.0
        %1487 = vmatpush2.msra.mxu0 0.0
        %1488 = vmatprep.mubr.f32.mxu0 0.0
        %1489 = vmatmul.mubr.f32.gmra.mxu0 %v1413
        %v1490 = vpop.f32.mrf.mxu0
        %v1491 = vadd.f32 %v1394, %v1490
        %v1492 = vpop.f32.mrf.mxu0
        %1493 = vmatprep.mubr.f32.mxu0 0.0
        %1494 = vmatmul.mubr.f32.gmra.mxu0 %v1416
        %v1495 = vpop.f32.mrf.mxu0
        %v1496 = vadd.f32 %v1399, %v1495
        %v1497 = vpop.f32.mrf.mxu0
        %1498 = vmatprep.mubr.f32.mxu0 0.0
        %1499 = vmatmul.mubr.f32.gmra.mxu0 %v1419
        %v1500 = vpop.f32.mrf.mxu0
        %v1501 = vadd.f32 %v1404, %v1500
        %v1502 = vpop.f32.mrf.mxu0
        %1503 = vmatprep.mubr.f32.mxu0 0.0
        %1504 = vmatmul.mubr.f32.gmra.mxu0 %v1422
        %v1505 = vpop.f32.mrf.mxu0
        %v1506 = vadd.f32 %v1409, %v1505
        %v1507 = vpop.f32.mrf.mxu0
        %1508 = vdwg.mxu0
        %1509 = vrot.lane.b32.xlu0 %v777, 112
        %v1510 = vpop.permute.xlu0 %1509
        %v1512 = vsel %vm798, %v1510, %v1060
        %v1513 = vsel %vm800, %v1512, %v777
        %v1514 = vsel %vm802, %v1513, %v790
        %v1515 = vlaneseq
        %v1516 = vshrl.u32 %v1515, 7
        %v1517 = vsub.s32 0, %v1516
        %v1518 = vrot.slane %v1514, %v1517
        %v1519 = vmul.f32 %v573, %v1518
        %v1520 = vmul.f32 %v578, %v1518
        %v1521 = vmul.f32 %v583, %v1518
        %v1522 = vmul.f32 %v588, %v1518
        %v1524 = vsel %vm493, %v1519, 0
        %v1527 = vsel %vm493, %v1520, 0
        %v1530 = vsel %vm493, %v1521, 0
        %v1533 = vsel %vm493, %v1522, 0
        %1535 = vmatprep.subr.mxu0 0.0
        %1536 = vmatpush1.msra.mxu0 0.0
        %1537 = vmatprep.subr.mxu0 0.0
        %1538 = vmatpush1.msra.mxu0 0.0
        %1539 = vmatprep.subr.mxu0 0.0
        %1540 = vmatpush1.msra.mxu0 0.0
        %1541 = vmatprep.subr.mxu0 0.0
        %1542 = vmatpush1.msra.mxu0 0.0
        %1543 = vmatprep.subr.mxu0 0.0
        %1544 = vmatpush1.msra.mxu0 0.0
        %1545 = vmatprep.subr.mxu0 0.0
        %1546 = vmatpush1.msra.mxu0 0.0
        %1547 = vmatprep.subr.mxu0 0.0
        %1548 = vmatpush1.msra.mxu0 0.0
        %1549 = vmatprep.subr.mxu0 0.0
        %1550 = vmatpush1.msra.mxu0 0.0
        %1551 = vmatprep.subr.mxu0 0.0
        %1552 = vmatpush1.msra.mxu0 0.0
        %1553 = vmatprep.subr.mxu0 0.0
        %1554 = vmatpush1.msra.mxu0 0.0
        %1555 = vmatprep.subr.mxu0 0.0
        %1556 = vmatpush1.msra.mxu0 0.0
        %1557 = vmatprep.subr.mxu0 0.0
        %1558 = vmatpush1.msra.mxu0 0.0
        %1559 = vmatprep.subr.mxu0 0.0
        %1560 = vmatpush1.msra.mxu0 %v781
        %1561 = vmatprep.subr.mxu0 0.0
        %1562 = vmatpush1.msra.mxu0 %v780
        %1563 = vmatprep.subr.mxu0 0.0
        %1564 = vmatpush1.msra.mxu0 %v779
        %1565 = vmatprep.subr.mxu0 0.0
        %1566 = vmatpush1.msra.mxu0 %v778
        %1567 = vmatprep.subr.mxu0 0.0
        %1568 = vmatpush2.msra.mxu0 0.0
        %1569 = vmatprep.subr.mxu0 0.0
        %1570 = vmatpush2.msra.mxu0 0.0
        %1571 = vmatprep.subr.mxu0 0.0
        %1572 = vmatpush2.msra.mxu0 0.0
        %1573 = vmatprep.subr.mxu0 0.0
        %1574 = vmatpush2.msra.mxu0 0.0
        %1575 = vmatprep.subr.mxu0 0.0
        %1576 = vmatpush2.msra.mxu0 0.0
        %1577 = vmatprep.subr.mxu0 0.0
        %1578 = vmatpush2.msra.mxu0 0.0
        %1579 = vmatprep.subr.mxu0 0.0
        %1580 = vmatpush2.msra.mxu0 0.0
        %1581 = vmatprep.subr.mxu0 0.0
        %1582 = vmatpush2.msra.mxu0 0.0
        %1583 = vmatprep.subr.mxu0 0.0
        %1584 = vmatpush2.msra.mxu0 0.0
        %1585 = vmatprep.subr.mxu0 0.0
        %1586 = vmatpush2.msra.mxu0 0.0
        %1587 = vmatprep.subr.mxu0 0.0
        %1588 = vmatpush2.msra.mxu0 0.0
        %1589 = vmatprep.subr.mxu0 0.0
        %1590 = vmatpush2.msra.mxu0 0.0
        %1591 = vmatprep.subr.mxu0 0.0
        %1592 = vmatpush2.msra.mxu0 0.0
        %1593 = vmatprep.subr.mxu0 0.0
        %1594 = vmatpush2.msra.mxu0 0.0
        %1595 = vmatprep.subr.mxu0 0.0
        %1596 = vmatpush2.msra.mxu0 0.0
        %1597 = vmatprep.subr.mxu0 0.0
        %1598 = vmatpush2.msra.mxu0 0.0
        %1599 = vmatprep.mubr.f32.mxu0 0.0
        %1600 = vmatmul.mubr.f32.gmra.mxu0 %v1524
        %v1601 = vpop.f32.mrf.mxu0
        %v1602 = vadd.f32 0.0, %v1601
        %v1603 = vpop.f32.mrf.mxu0
        %1604 = vmatprep.mubr.f32.mxu0 0.0
        %1605 = vmatmul.mubr.f32.gmra.mxu0 %v1527
        %v1606 = vpop.f32.mrf.mxu0
        %v1607 = vadd.f32 0.0, %v1606
        %v1608 = vpop.f32.mrf.mxu0
        %1609 = vmatprep.mubr.f32.mxu0 0.0
        %1610 = vmatmul.mubr.f32.gmra.mxu0 %v1530
        %v1611 = vpop.f32.mrf.mxu0
        %v1612 = vadd.f32 0.0, %v1611
        %v1613 = vpop.f32.mrf.mxu0
        %1614 = vmatprep.mubr.f32.mxu0 0.0
        %1615 = vmatmul.mubr.f32.gmra.mxu0 %v1533
        %v1616 = vpop.f32.mrf.mxu0
        %v1617 = vadd.f32 0.0, %v1616
        %v1618 = vpop.f32.mrf.mxu0
        %1619 = vdwg.mxu0
        %v1620 = vsel %vm909, %v1602, -inf
        %1621 = vmax.xlane.f32.xlu0 %v1620
        %v1622 = vpop.xlane.xlu0 %1621
        %v1623 = vsel %vm909, %v1607, -inf
        %1624 = vmax.xlane.f32.xlu0 %v1623
        %v1625 = vpop.xlane.xlu0 %1624
        %v1626 = vsel %vm909, %v1612, -inf
        %1627 = vmax.xlane.f32.xlu0 %v1626
        %v1628 = vpop.xlane.xlu0 %1627
        %v1629 = vsel %vm909, %v1617, -inf
        %1630 = vmax.xlane.f32.xlu0 %v1629
        %v1631 = vpop.xlane.xlu0 %1630
        %v1632 = vsub.f32 %v1602, %v1622
        %v1633 = vsub.f32 %v1607, %v1625
        %v1634 = vsub.f32 %v1612, %v1628
        %v1635 = vsub.f32 %v1617, %v1631
        %v1636 = vmul.f32 %v1632, 1.442695
        %v1637 = vpow.pop %v1636
        %v1638 = vmul.f32 %v1633, 1.442695
        %v1639 = vpow.pop %v1638
        %v1640 = vmul.f32 %v1634, 1.442695
        %v1641 = vpow.pop %v1640
        %v1642 = vmul.f32 %v1635, 1.442695
        %v1643 = vpow.pop %v1642
        %v1644 = vsel %vm909, %v1637, 0.0
        %1645 = vadd.xlane.f32.xlu0 %v1644
        %v1646 = vpop.xlane.xlu0 %1645
        %v1647 = vsel %vm909, %v1639, 0.0
        %1648 = vadd.xlane.f32.xlu0 %v1647
        %v1649 = vpop.xlane.xlu0 %1648
        %v1650 = vsel %vm909, %v1641, 0.0
        %1651 = vadd.xlane.f32.xlu0 %v1650
        %v1652 = vpop.xlane.xlu0 %1651
        %v1653 = vsel %vm909, %v1643, 0.0
        %1654 = vadd.xlane.f32.xlu0 %v1653
        %v1655 = vpop.xlane.xlu0 %1654
        %v1656 = vrcp.pop %v1646
        %v1657 = vmul.f32 %v1637, %v1656
        %v1658 = vrcp.pop %v1649
        %v1659 = vmul.f32 %v1639, %v1658
        %v1660 = vrcp.pop %v1652
        %v1661 = vmul.f32 %v1641, %v1660
        %v1662 = vrcp.pop %v1655
        %v1663 = vmul.f32 %v1643, %v1662
        %v1665 = vsel %vm909, %v1657, 0
        %v1668 = vsel %vm909, %v1659, 0
        %v1671 = vsel %vm909, %v1661, 0
        %v1674 = vsel %vm909, %v1663, 0
        %1676 = vmatprep.subr.mxu0 0.0
        %1677 = vmatpush1.msra.mxu0 0.0
        %1678 = vmatprep.subr.mxu0 0.0
        %1679 = vmatpush1.msra.mxu0 0.0
        %1680 = vmatprep.subr.mxu0 0.0
        %1681 = vmatpush1.msra.mxu0 0.0
        %1682 = vmatprep.subr.mxu0 0.0
        %1683 = vmatpush1.msra.mxu0 0.0
        %1684 = vmatprep.subr.mxu0 0.0
        %1685 = vmatpush1.msra.mxu0 0.0
        %1686 = vmatprep.subr.mxu0 0.0
        %1687 = vmatpush1.msra.mxu0 0.0
        %1688 = vmatprep.subr.mxu0 0.0
        %1689 = vmatpush1.msra.mxu0 0.0
        %1690 = vmatprep.subr.mxu0 0.0
        %1691 = vmatpush1.msra.mxu0 0.0
        %1692 = vmatprep.subr.mxu0 0.0
        %1693 = vmatpush1.msra.mxu0 0.0
        %1694 = vmatprep.subr.mxu0 0.0
        %1695 = vmatpush1.msra.mxu0 0.0
        %1696 = vmatprep.subr.mxu0 0.0
        %1697 = vmatpush1.msra.mxu0 0.0
        %1698 = vmatprep.subr.mxu0 0.0
        %1699 = vmatpush1.msra.mxu0 0.0
        %1700 = vmatprep.subr.mxu0 0.0
        %1701 = vmatpush1.msra.mxu0 0.0
        %1702 = vmatprep.subr.mxu0 0.0
        %1703 = vmatpush1.msra.mxu0 0.0
        %1704 = vmatprep.subr.mxu0 0.0
        %1705 = vmatpush1.msra.mxu0 0.0
        %1706 = vmatprep.subr.mxu0 0.0
        %1707 = vmatpush1.msra.mxu0 %v968
        %1708 = vmatprep.subr.mxu0 0.0
        %1709 = vmatpush2.msra.mxu0 0.0
        %1710 = vmatprep.subr.mxu0 0.0
        %1711 = vmatpush2.msra.mxu0 0.0
        %1712 = vmatprep.subr.mxu0 0.0
        %1713 = vmatpush2.msra.mxu0 0.0
        %1714 = vmatprep.subr.mxu0 0.0
        %1715 = vmatpush2.msra.mxu0 0.0
        %1716 = vmatprep.subr.mxu0 0.0
        %1717 = vmatpush2.msra.mxu0 0.0
        %1718 = vmatprep.subr.mxu0 0.0
        %1719 = vmatpush2.msra.mxu0 0.0
        %1720 = vmatprep.subr.mxu0 0.0
        %1721 = vmatpush2.msra.mxu0 0.0
        %1722 = vmatprep.subr.mxu0 0.0
        %1723 = vmatpush2.msra.mxu0 0.0
        %1724 = vmatprep.subr.mxu0 0.0
        %1725 = vmatpush2.msra.mxu0 0.0
        %1726 = vmatprep.subr.mxu0 0.0
        %1727 = vmatpush2.msra.mxu0 0.0
        %1728 = vmatprep.subr.mxu0 0.0
        %1729 = vmatpush2.msra.mxu0 0.0
        %1730 = vmatprep.subr.mxu0 0.0
        %1731 = vmatpush2.msra.mxu0 0.0
        %1732 = vmatprep.subr.mxu0 0.0
        %1733 = vmatpush2.msra.mxu0 0.0
        %1734 = vmatprep.subr.mxu0 0.0
        %1735 = vmatpush2.msra.mxu0 0.0
        %1736 = vmatprep.subr.mxu0 0.0
        %1737 = vmatpush2.msra.mxu0 0.0
        %1738 = vmatprep.subr.mxu0 0.0
        %1739 = vmatpush2.msra.mxu0 0.0
        %1740 = vmatprep.mubr.f32.mxu0 0.0
        %1741 = vmatmul.mubr.f32.gmra.mxu0 %v1665
        %v1742 = vpop.f32.mrf.mxu0
        %v1743 = vadd.f32 0.0, %v1742
        %v1744 = vpop.f32.mrf.mxu0
        %1745 = vmatprep.mubr.f32.mxu0 0.0
        %1746 = vmatmul.mubr.f32.gmra.mxu0 %v1668
        %v1747 = vpop.f32.mrf.mxu0
        %v1748 = vadd.f32 0.0, %v1747
        %v1749 = vpop.f32.mrf.mxu0
        %1750 = vmatprep.mubr.f32.mxu0 0.0
        %1751 = vmatmul.mubr.f32.gmra.mxu0 %v1671
        %v1752 = vpop.f32.mrf.mxu0
        %v1753 = vadd.f32 0.0, %v1752
        %v1754 = vpop.f32.mrf.mxu0
        %1755 = vmatprep.mubr.f32.mxu0 0.0
        %1756 = vmatmul.mubr.f32.gmra.mxu0 %v1674
        %v1757 = vpop.f32.mrf.mxu0
        %v1758 = vadd.f32 0.0, %v1757
        %v1759 = vpop.f32.mrf.mxu0
        %1760 = vdwg.mxu0
        %v1761 = vmul.f32 %v1743, %v681
        %v1762 = vmul.f32 %v1748, %v686
        %v1763 = vmul.f32 %v1753, %v691
        %v1764 = vmul.f32 %v1758, %v696
        %v1766 = vsel %vm493, %v1761, 0
        %v1769 = vsel %vm493, %v1762, 0
        %v1772 = vsel %vm493, %v1763, 0
        %v1775 = vsel %vm493, %v1764, 0
        %1777 = vmatprep.subr.mxu0 0.0
        %1778 = vmatpush1.msra.mxu0 0.0
        %1779 = vmatprep.subr.mxu0 0.0
        %1780 = vmatpush1.msra.mxu0 0.0
        %1781 = vmatprep.subr.mxu0 0.0
        %1782 = vmatpush1.msra.mxu0 0.0
        %1783 = vmatprep.subr.mxu0 0.0
        %1784 = vmatpush1.msra.mxu0 0.0
        %1785 = vmatprep.subr.mxu0 0.0
        %1786 = vmatpush1.msra.mxu0 0.0
        %1787 = vmatprep.subr.mxu0 0.0
        %1788 = vmatpush1.msra.mxu0 0.0
        %1789 = vmatprep.subr.mxu0 0.0
        %1790 = vmatpush1.msra.mxu0 0.0
        %1791 = vmatprep.subr.mxu0 0.0
        %1792 = vmatpush1.msra.mxu0 0.0
        %1793 = vmatprep.subr.mxu0 0.0
        %1794 = vmatpush1.msra.mxu0 0.0
        %1795 = vmatprep.subr.mxu0 0.0
        %1796 = vmatpush1.msra.mxu0 0.0
        %1797 = vmatprep.subr.mxu0 0.0
        %1798 = vmatpush1.msra.mxu0 0.0
        %1799 = vmatprep.subr.mxu0 0.0
        %1800 = vmatpush1.msra.mxu0 0.0
        %1801 = vmatprep.subr.mxu0 0.0
        %1802 = vmatpush1.msra.mxu0 %v785
        %1803 = vmatprep.subr.mxu0 0.0
        %1804 = vmatpush1.msra.mxu0 %v785
        %1805 = vmatprep.subr.mxu0 0.0
        %1806 = vmatpush1.msra.mxu0 %v785
        %1807 = vmatprep.subr.mxu0 0.0
        %1808 = vmatpush1.msra.mxu0 %v785
        %1809 = vmatprep.subr.mxu0 0.0
        %1810 = vmatpush2.msra.mxu0 0.0
        %1811 = vmatprep.subr.mxu0 0.0
        %1812 = vmatpush2.msra.mxu0 0.0
        %1813 = vmatprep.subr.mxu0 0.0
        %1814 = vmatpush2.msra.mxu0 0.0
        %1815 = vmatprep.subr.mxu0 0.0
        %1816 = vmatpush2.msra.mxu0 0.0
        %1817 = vmatprep.subr.mxu0 0.0
        %1818 = vmatpush2.msra.mxu0 0.0
        %1819 = vmatprep.subr.mxu0 0.0
        %1820 = vmatpush2.msra.mxu0 0.0
        %1821 = vmatprep.subr.mxu0 0.0
        %1822 = vmatpush2.msra.mxu0 0.0
        %1823 = vmatprep.subr.mxu0 0.0
        %1824 = vmatpush2.msra.mxu0 0.0
        %1825 = vmatprep.subr.mxu0 0.0
        %1826 = vmatpush2.msra.mxu0 0.0
        %1827 = vmatprep.subr.mxu0 0.0
        %1828 = vmatpush2.msra.mxu0 0.0
        %1829 = vmatprep.subr.mxu0 0.0
        %1830 = vmatpush2.msra.mxu0 0.0
        %1831 = vmatprep.subr.mxu0 0.0
        %1832 = vmatpush2.msra.mxu0 0.0
        %1833 = vmatprep.subr.mxu0 0.0
        %1834 = vmatpush2.msra.mxu0 0.0
        %1835 = vmatprep.subr.mxu0 0.0
        %1836 = vmatpush2.msra.mxu0 0.0
        %1837 = vmatprep.subr.mxu0 0.0
        %1838 = vmatpush2.msra.mxu0 0.0
        %1839 = vmatprep.subr.mxu0 0.0
        %1840 = vmatpush2.msra.mxu0 0.0
        %1841 = vmatprep.mubr.f32.mxu0 0.0
        %1842 = vmatmul.mubr.f32.gmra.mxu0 %v1766
        %v1843 = vpop.f32.mrf.mxu0
        %v1844 = vadd.f32 0.0, %v1843
        %v1845 = vpop.f32.mrf.mxu0
        %1846 = vmatprep.mubr.f32.mxu0 0.0
        %1847 = vmatmul.mubr.f32.gmra.mxu0 %v1769
        %v1848 = vpop.f32.mrf.mxu0
        %v1849 = vadd.f32 0.0, %v1848
        %v1850 = vpop.f32.mrf.mxu0
        %1851 = vmatprep.mubr.f32.mxu0 0.0
        %1852 = vmatmul.mubr.f32.gmra.mxu0 %v1772
        %v1853 = vpop.f32.mrf.mxu0
        %v1854 = vadd.f32 0.0, %v1853
        %v1855 = vpop.f32.mrf.mxu0
        %1856 = vmatprep.mubr.f32.mxu0 0.0
        %1857 = vmatmul.mubr.f32.gmra.mxu0 %v1775
        %v1858 = vpop.f32.mrf.mxu0
        %v1859 = vadd.f32 0.0, %v1858
        %v1860 = vpop.f32.mrf.mxu0
        %1861 = vdwg.mxu0
        %v1862 = vadd.f32 %v1491, %v1844
        %v1863 = vadd.f32 %v1496, %v1849
        %v1864 = vadd.f32 %v1501, %v1854
        %v1865 = vadd.f32 %v1506, %v1859
        %1866 = vrot.lane.b32.xlu0 %v777, 104
        %v1867 = vpop.permute.xlu0 %1866
        %v1869 = vsel %vm798, %v1867, %v1510
        %v1870 = vsel %vm800, %v1869, %v1060
        %v1871 = vsel %vm802, %v1870, %v777
        %v1872 = vlaneseq
        %v1873 = vshrl.u32 %v1872, 7
        %v1874 = vsub.s32 0, %v1873
        %v1875 = vrot.slane %v1871, %v1874
        %v1876 = vmul.f32 %v573, %v1875
        %v1877 = vmul.f32 %v578, %v1875
        %v1878 = vmul.f32 %v583, %v1875
        %v1879 = vmul.f32 %v588, %v1875
        %v1881 = vsel %vm493, %v1876, 0
        %v1884 = vsel %vm493, %v1877, 0
        %v1887 = vsel %vm493, %v1878, 0
        %v1890 = vsel %vm493, %v1879, 0
        %1892 = vmatprep.subr.mxu0 0.0
        %1893 = vmatpush1.msra.mxu0 0.0
        %1894 = vmatprep.subr.mxu0 0.0
        %1895 = vmatpush1.msra.mxu0 0.0
        %1896 = vmatprep.subr.mxu0 0.0
        %1897 = vmatpush1.msra.mxu0 0.0
        %1898 = vmatprep.subr.mxu0 0.0
        %1899 = vmatpush1.msra.mxu0 0.0
        %1900 = vmatprep.subr.mxu0 0.0
        %1901 = vmatpush1.msra.mxu0 0.0
        %1902 = vmatprep.subr.mxu0 0.0
        %1903 = vmatpush1.msra.mxu0 0.0
        %1904 = vmatprep.subr.mxu0 0.0
        %1905 = vmatpush1.msra.mxu0 0.0
        %1906 = vmatprep.subr.mxu0 0.0
        %1907 = vmatpush1.msra.mxu0 0.0
        %1908 = vmatprep.subr.mxu0 0.0
        %1909 = vmatpush1.msra.mxu0 0.0
        %1910 = vmatprep.subr.mxu0 0.0
        %1911 = vmatpush1.msra.mxu0 0.0
        %1912 = vmatprep.subr.mxu0 0.0
        %1913 = vmatpush1.msra.mxu0 0.0
        %1914 = vmatprep.subr.mxu0 0.0
        %1915 = vmatpush1.msra.mxu0 0.0
        %1916 = vmatprep.subr.mxu0 0.0
        %1917 = vmatpush1.msra.mxu0 %v781
        %1918 = vmatprep.subr.mxu0 0.0
        %1919 = vmatpush1.msra.mxu0 %v780
        %1920 = vmatprep.subr.mxu0 0.0
        %1921 = vmatpush1.msra.mxu0 %v779
        %1922 = vmatprep.subr.mxu0 0.0
        %1923 = vmatpush1.msra.mxu0 %v778
        %1924 = vmatprep.subr.mxu0 0.0
        %1925 = vmatpush2.msra.mxu0 0.0
        %1926 = vmatprep.subr.mxu0 0.0
        %1927 = vmatpush2.msra.mxu0 0.0
        %1928 = vmatprep.subr.mxu0 0.0
        %1929 = vmatpush2.msra.mxu0 0.0
        %1930 = vmatprep.subr.mxu0 0.0
        %1931 = vmatpush2.msra.mxu0 0.0
        %1932 = vmatprep.subr.mxu0 0.0
        %1933 = vmatpush2.msra.mxu0 0.0
        %1934 = vmatprep.subr.mxu0 0.0
        %1935 = vmatpush2.msra.mxu0 0.0
        %1936 = vmatprep.subr.mxu0 0.0
        %1937 = vmatpush2.msra.mxu0 0.0
        %1938 = vmatprep.subr.mxu0 0.0
        %1939 = vmatpush2.msra.mxu0 0.0
        %1940 = vmatprep.subr.mxu0 0.0
        %1941 = vmatpush2.msra.mxu0 0.0
        %1942 = vmatprep.subr.mxu0 0.0
        %1943 = vmatpush2.msra.mxu0 0.0
        %1944 = vmatprep.subr.mxu0 0.0
        %1945 = vmatpush2.msra.mxu0 0.0
        %1946 = vmatprep.subr.mxu0 0.0
        %1947 = vmatpush2.msra.mxu0 0.0
        %1948 = vmatprep.subr.mxu0 0.0
        %1949 = vmatpush2.msra.mxu0 0.0
        %1950 = vmatprep.subr.mxu0 0.0
        %1951 = vmatpush2.msra.mxu0 0.0
        %1952 = vmatprep.subr.mxu0 0.0
        %1953 = vmatpush2.msra.mxu0 0.0
        %1954 = vmatprep.subr.mxu0 0.0
        %1955 = vmatpush2.msra.mxu0 0.0
        %1956 = vmatprep.mubr.f32.mxu0 0.0
        %1957 = vmatmul.mubr.f32.gmra.mxu0 %v1881
        %v1958 = vpop.f32.mrf.mxu0
        %v1959 = vadd.f32 0.0, %v1958
        %v1960 = vpop.f32.mrf.mxu0
        %1961 = vmatprep.mubr.f32.mxu0 0.0
        %1962 = vmatmul.mubr.f32.gmra.mxu0 %v1884
        %v1963 = vpop.f32.mrf.mxu0
        %v1964 = vadd.f32 0.0, %v1963
        %v1965 = vpop.f32.mrf.mxu0
        %1966 = vmatprep.mubr.f32.mxu0 0.0
        %1967 = vmatmul.mubr.f32.gmra.mxu0 %v1887
        %v1968 = vpop.f32.mrf.mxu0
        %v1969 = vadd.f32 0.0, %v1968
        %v1970 = vpop.f32.mrf.mxu0
        %1971 = vmatprep.mubr.f32.mxu0 0.0
        %1972 = vmatmul.mubr.f32.gmra.mxu0 %v1890
        %v1973 = vpop.f32.mrf.mxu0
        %v1974 = vadd.f32 0.0, %v1973
        %v1975 = vpop.f32.mrf.mxu0
        %1976 = vdwg.mxu0
        %v1977 = vsel %vm909, %v1959, -inf
        %1978 = vmax.xlane.f32.xlu0 %v1977
        %v1979 = vpop.xlane.xlu0 %1978
        %v1980 = vsel %vm909, %v1964, -inf
        %1981 = vmax.xlane.f32.xlu0 %v1980
        %v1982 = vpop.xlane.xlu0 %1981
        %v1983 = vsel %vm909, %v1969, -inf
        %1984 = vmax.xlane.f32.xlu0 %v1983
        %v1985 = vpop.xlane.xlu0 %1984
        %v1986 = vsel %vm909, %v1974, -inf
        %1987 = vmax.xlane.f32.xlu0 %v1986
        %v1988 = vpop.xlane.xlu0 %1987
        %v1989 = vsub.f32 %v1959, %v1979
        %v1990 = vsub.f32 %v1964, %v1982
        %v1991 = vsub.f32 %v1969, %v1985
        %v1992 = vsub.f32 %v1974, %v1988
        %v1993 = vmul.f32 %v1989, 1.442695
        %v1994 = vpow.pop %v1993
        %v1995 = vmul.f32 %v1990, 1.442695
        %v1996 = vpow.pop %v1995
        %v1997 = vmul.f32 %v1991, 1.442695
        %v1998 = vpow.pop %v1997
        %v1999 = vmul.f32 %v1992, 1.442695
        %v2000 = vpow.pop %v1999
        %v2001 = vsel %vm909, %v1994, 0.0
        %2002 = vadd.xlane.f32.xlu0 %v2001
        %v2003 = vpop.xlane.xlu0 %2002
        %v2004 = vsel %vm909, %v1996, 0.0
        %2005 = vadd.xlane.f32.xlu0 %v2004
        %v2006 = vpop.xlane.xlu0 %2005
        %v2007 = vsel %vm909, %v1998, 0.0
        %2008 = vadd.xlane.f32.xlu0 %v2007
        %v2009 = vpop.xlane.xlu0 %2008
        %v2010 = vsel %vm909, %v2000, 0.0
        %2011 = vadd.xlane.f32.xlu0 %v2010
        %v2012 = vpop.xlane.xlu0 %2011
        %v2013 = vrcp.pop %v2003
        %v2014 = vmul.f32 %v1994, %v2013
        %v2015 = vrcp.pop %v2006
        %v2016 = vmul.f32 %v1996, %v2015
        %v2017 = vrcp.pop %v2009
        %v2018 = vmul.f32 %v1998, %v2017
        %v2019 = vrcp.pop %v2012
        %v2020 = vmul.f32 %v2000, %v2019
        %v2022 = vsel %vm909, %v2014, 0
        %v2025 = vsel %vm909, %v2016, 0
        %v2028 = vsel %vm909, %v2018, 0
        %v2031 = vsel %vm909, %v2020, 0
        %2033 = vmatprep.subr.mxu0 0.0
        %2034 = vmatpush1.msra.mxu0 0.0
        %2035 = vmatprep.subr.mxu0 0.0
        %2036 = vmatpush1.msra.mxu0 0.0
        %2037 = vmatprep.subr.mxu0 0.0
        %2038 = vmatpush1.msra.mxu0 0.0
        %2039 = vmatprep.subr.mxu0 0.0
        %2040 = vmatpush1.msra.mxu0 0.0
        %2041 = vmatprep.subr.mxu0 0.0
        %2042 = vmatpush1.msra.mxu0 0.0
        %2043 = vmatprep.subr.mxu0 0.0
        %2044 = vmatpush1.msra.mxu0 0.0
        %2045 = vmatprep.subr.mxu0 0.0
        %2046 = vmatpush1.msra.mxu0 0.0
        %2047 = vmatprep.subr.mxu0 0.0
        %2048 = vmatpush1.msra.mxu0 0.0
        %2049 = vmatprep.subr.mxu0 0.0
        %2050 = vmatpush1.msra.mxu0 0.0
        %2051 = vmatprep.subr.mxu0 0.0
        %2052 = vmatpush1.msra.mxu0 0.0
        %2053 = vmatprep.subr.mxu0 0.0
        %2054 = vmatpush1.msra.mxu0 0.0
        %2055 = vmatprep.subr.mxu0 0.0
        %2056 = vmatpush1.msra.mxu0 0.0
        %2057 = vmatprep.subr.mxu0 0.0
        %2058 = vmatpush1.msra.mxu0 0.0
        %2059 = vmatprep.subr.mxu0 0.0
        %2060 = vmatpush1.msra.mxu0 0.0
        %2061 = vmatprep.subr.mxu0 0.0
        %2062 = vmatpush1.msra.mxu0 0.0
        %2063 = vmatprep.subr.mxu0 0.0
        %2064 = vmatpush1.msra.mxu0 %v968
        %2065 = vmatprep.subr.mxu0 0.0
        %2066 = vmatpush2.msra.mxu0 0.0
        %2067 = vmatprep.subr.mxu0 0.0
        %2068 = vmatpush2.msra.mxu0 0.0
        %2069 = vmatprep.subr.mxu0 0.0
        %2070 = vmatpush2.msra.mxu0 0.0
        %2071 = vmatprep.subr.mxu0 0.0
        %2072 = vmatpush2.msra.mxu0 0.0
        %2073 = vmatprep.subr.mxu0 0.0
        %2074 = vmatpush2.msra.mxu0 0.0
        %2075 = vmatprep.subr.mxu0 0.0
        %2076 = vmatpush2.msra.mxu0 0.0
        %2077 = vmatprep.subr.mxu0 0.0
        %2078 = vmatpush2.msra.mxu0 0.0
        %2079 = vmatprep.subr.mxu0 0.0
        %2080 = vmatpush2.msra.mxu0 0.0
        %2081 = vmatprep.subr.mxu0 0.0
        %2082 = vmatpush2.msra.mxu0 0.0
        %2083 = vmatprep.subr.mxu0 0.0
        %2084 = vmatpush2.msra.mxu0 0.0
        %2085 = vmatprep.subr.mxu0 0.0
        %2086 = vmatpush2.msra.mxu0 0.0
        %2087 = vmatprep.subr.mxu0 0.0
        %2088 = vmatpush2.msra.mxu0 0.0
        %2089 = vmatprep.subr.mxu0 0.0
        %2090 = vmatpush2.msra.mxu0 0.0
        %2091 = vmatprep.subr.mxu0 0.0
        %2092 = vmatpush2.msra.mxu0 0.0
        %2093 = vmatprep.subr.mxu0 0.0
        %2094 = vmatpush2.msra.mxu0 0.0
        %2095 = vmatprep.subr.mxu0 0.0
        %2096 = vmatpush2.msra.mxu0 0.0
        %2097 = vmatprep.mubr.f32.mxu0 0.0
        %2098 = vmatmul.mubr.f32.gmra.mxu0 %v2022
        %v2099 = vpop.f32.mrf.mxu0
        %v2100 = vadd.f32 0.0, %v2099
        %v2101 = vpop.f32.mrf.mxu0
        %2102 = vmatprep.mubr.f32.mxu0 0.0
        %2103 = vmatmul.mubr.f32.gmra.mxu0 %v2025
        %v2104 = vpop.f32.mrf.mxu0
        %v2105 = vadd.f32 0.0, %v2104
        %v2106 = vpop.f32.mrf.mxu0
        %2107 = vmatprep.mubr.f32.mxu0 0.0
        %2108 = vmatmul.mubr.f32.gmra.mxu0 %v2028
        %v2109 = vpop.f32.mrf.mxu0
        %v2110 = vadd.f32 0.0, %v2109
        %v2111 = vpop.f32.mrf.mxu0
        %2112 = vmatprep.mubr.f32.mxu0 0.0
        %2113 = vmatmul.mubr.f32.gmra.mxu0 %v2031
        %v2114 = vpop.f32.mrf.mxu0
        %v2115 = vadd.f32 0.0, %v2114
        %v2116 = vpop.f32.mrf.mxu0
        %2117 = vdwg.mxu0
        %v2118 = vmul.f32 %v2100, %v681
        %v2119 = vmul.f32 %v2105, %v686
        %v2120 = vmul.f32 %v2110, %v691
        %v2121 = vmul.f32 %v2115, %v696
        %v2123 = vsel %vm493, %v2118, 0
        %v2126 = vsel %vm493, %v2119, 0
        %v2129 = vsel %vm493, %v2120, 0
        %v2132 = vsel %vm493, %v2121, 0
        %2134 = vmatprep.subr.mxu0 0.0
        %2135 = vmatpush1.msra.mxu0 0.0
        %2136 = vmatprep.subr.mxu0 0.0
        %2137 = vmatpush1.msra.mxu0 0.0
        %2138 = vmatprep.subr.mxu0 0.0
        %2139 = vmatpush1.msra.mxu0 0.0
        %2140 = vmatprep.subr.mxu0 0.0
        %2141 = vmatpush1.msra.mxu0 0.0
        %2142 = vmatprep.subr.mxu0 0.0
        %2143 = vmatpush1.msra.mxu0 0.0
        %2144 = vmatprep.subr.mxu0 0.0
        %2145 = vmatpush1.msra.mxu0 0.0
        %2146 = vmatprep.subr.mxu0 0.0
        %2147 = vmatpush1.msra.mxu0 0.0
        %2148 = vmatprep.subr.mxu0 0.0
        %2149 = vmatpush1.msra.mxu0 0.0
        %2150 = vmatprep.subr.mxu0 0.0
        %2151 = vmatpush1.msra.mxu0 0.0
        %2152 = vmatprep.subr.mxu0 0.0
        %2153 = vmatpush1.msra.mxu0 0.0
        %2154 = vmatprep.subr.mxu0 0.0
        %2155 = vmatpush1.msra.mxu0 0.0
        %2156 = vmatprep.subr.mxu0 0.0
        %2157 = vmatpush1.msra.mxu0 0.0
        %2158 = vmatprep.subr.mxu0 0.0
        %2159 = vmatpush1.msra.mxu0 %v786
        %2160 = vmatprep.subr.mxu0 0.0
        %2161 = vmatpush1.msra.mxu0 %v786
        %2162 = vmatprep.subr.mxu0 0.0
        %2163 = vmatpush1.msra.mxu0 %v786
        %2164 = vmatprep.subr.mxu0 0.0
        %2165 = vmatpush1.msra.mxu0 %v786
        %2166 = vmatprep.subr.mxu0 0.0
        %2167 = vmatpush2.msra.mxu0 0.0
        %2168 = vmatprep.subr.mxu0 0.0
        %2169 = vmatpush2.msra.mxu0 0.0
        %2170 = vmatprep.subr.mxu0 0.0
        %2171 = vmatpush2.msra.mxu0 0.0
        %2172 = vmatprep.subr.mxu0 0.0
        %2173 = vmatpush2.msra.mxu0 0.0
        %2174 = vmatprep.subr.mxu0 0.0
        %2175 = vmatpush2.msra.mxu0 0.0
        %2176 = vmatprep.subr.mxu0 0.0
        %2177 = vmatpush2.msra.mxu0 0.0
        %2178 = vmatprep.subr.mxu0 0.0
        %2179 = vmatpush2.msra.mxu0 0.0
        %2180 = vmatprep.subr.mxu0 0.0
        %2181 = vmatpush2.msra.mxu0 0.0
        %2182 = vmatprep.subr.mxu0 0.0
        %2183 = vmatpush2.msra.mxu0 0.0
        %2184 = vmatprep.subr.mxu0 0.0
        %2185 = vmatpush2.msra.mxu0 0.0
        %2186 = vmatprep.subr.mxu0 0.0
        %2187 = vmatpush2.msra.mxu0 0.0
        %2188 = vmatprep.subr.mxu0 0.0
        %2189 = vmatpush2.msra.mxu0 0.0
        %2190 = vmatprep.subr.mxu0 0.0
        %2191 = vmatpush2.msra.mxu0 0.0
        %2192 = vmatprep.subr.mxu0 0.0
        %2193 = vmatpush2.msra.mxu0 0.0
        %2194 = vmatprep.subr.mxu0 0.0
        %2195 = vmatpush2.msra.mxu0 0.0
        %2196 = vmatprep.subr.mxu0 0.0
        %2197 = vmatpush2.msra.mxu0 0.0
        %2198 = vmatprep.mubr.f32.mxu0 0.0
        %2199 = vmatmul.mubr.f32.gmra.mxu0 %v2123
        %v2200 = vpop.f32.mrf.mxu0
        %v2201 = vadd.f32 0.0, %v2200
        %v2202 = vpop.f32.mrf.mxu0
        %2203 = vmatprep.mubr.f32.mxu0 0.0
        %2204 = vmatmul.mubr.f32.gmra.mxu0 %v2126
        %v2205 = vpop.f32.mrf.mxu0
        %v2206 = vadd.f32 0.0, %v2205
        %v2207 = vpop.f32.mrf.mxu0
        %2208 = vmatprep.mubr.f32.mxu0 0.0
        %2209 = vmatmul.mubr.f32.gmra.mxu0 %v2129
        %v2210 = vpop.f32.mrf.mxu0
        %v2211 = vadd.f32 0.0, %v2210
        %v2212 = vpop.f32.mrf.mxu0
        %2213 = vmatprep.mubr.f32.mxu0 0.0
        %2214 = vmatmul.mubr.f32.gmra.mxu0 %v2132
        %v2215 = vpop.f32.mrf.mxu0
        %v2216 = vadd.f32 0.0, %v2215
        %v2217 = vpop.f32.mrf.mxu0
        %2218 = vdwg.mxu0
        %v2219 = vadd.f32 %v1862, %v2201
        %v2220 = vadd.f32 %v1863, %v2206
        %v2221 = vadd.f32 %v1864, %v2211
        %v2222 = vadd.f32 %v1865, %v2216
        %v2224 = vlaneseq
        %v2225 = vshrl.u32 %v2224, 7
        %v2226 = vsub.s32 0, %v2225
        %v2227 = vrot.slane %v787, %v2226
        %v2229 = vadd.f32 %v2219, %v2227
        %v2230 = vadd.f32 %v2220, %v2227
        %v2231 = vadd.f32 %v2221, %v2227
        %v2232 = vadd.f32 %v2222, %v2227
        %2233 = vst.msk [vmem:[%s459] sm:$0xff] %vm493, %v2229
        %2234 = vst.msk [vmem:[%s459 + $0x8] sm:$0xff] %vm493, %v2230
        %2235 = vst.msk [vmem:[%s459 + $0x10] sm:$0xff] %vm493, %v2231
        %2236 = vst.msk [vmem:[%s459 + $0x18] sm:$0xff] %vm493, %v2232
        %s2237 = sand.u32 %s323, 1
        %s2238 = scalar_lea.sflag [#allocation3], %s2237
        %s2239 = sand.u32 %s323, 1
        %s2240 = smul.addr %s2239, 32
        %s2241 = scalar_lea.vmem [#allocation2], %s2240
        // Predicated region
        $region73: #{mha_kqv.1} parent=71 // pred_check
          %p2242 = pneg %p333
        $region74: #{mha_kqv.1} parent=71 // pred_check_branch
          %2244 = sbr.rel (%p2242) target = $region76
        $region75: #{mha_kqv.1} parent=71 // pred_region
          %s2246 = ssub.s32 512, 512
          %2247 = vsyncadd %s2238, %s2246
          %s2248 = smul.addr %s27, 4
          %s2249 = smul.addr %s2248, 128
          %s2250 = scalar_lea.hbm %s13, %s2249
          %s2251 = sshll.u32 %s2241, 4
          %s2252 = int_to_ptr.vmem [resolvable:$true] %s2251
          %2257 = dma.vmem_to_hbm [thread:$0]  %s2252, 512, %s2250, %s2238, 128, 128, 8
        $region76: #{mha_kqv.1} parent=71 // pred_fallthru
          _
      $region72: #{mha_kqv.1} parent=5 // pred_fallthru
        _
      %p2258 = scmp.le.s32.totalorder 2, %s22
      // Predicated region
      $region77: #{mha_kqv.1} parent=5 // pred_check
        %p2259 = pneg %p2258
      $region78: #{mha_kqv.1} parent=5 // pred_check_branch
        %2261 = sbr.rel (%p2259) target = $region80
      $region79: #{mha_kqv.1} parent=5 // pred_region
        %s2262 = ssub.s32 %s22, 2
        // Predicated region
        $region81: #{mha_kqv.1} parent=79 // pred_check
          %p2263 = pneg %p339
        $region82: #{mha_kqv.1} parent=79 // pred_check_branch
          %2265 = sbr.rel (%p2263) target = $region84
        $region83: #{mha_kqv.1} parent=79 // pred_region
          %s2266 = sand.u32 %s324, 1
          %s2267 = scalar_lea.sflag [#allocation3], %s2266
          %s2268 = sand.u32 %s324, 1
          %s2269 = smul.addr %s2268, 32
          %s2270 = scalar_lea.vmem [#allocation2], %s2269
          %2271 = dma.done %s2267, 512
        $region84: #{mha_kqv.1} parent=79 // pred_fallthru
          _
      $region80: #{mha_kqv.1} parent=5 // pred_fallthru
        _
    $region6: #{mha_kqv.1} parent=1 // loop_footer
      %s26 = sadd.s32 1, %s22
    $region7: #{mha_kqv.1} parent=1 // loop_footer_branch
      %21 = sbr.rel target = $region3
    $region8: #{mha_kqv.1} parent=1 // loop_exit
      _
    %2272 = vsyncpa [#allocation3], 1
    %s2273 = scalar_lea.sflag [#allocation3], 1
    %2274 = vsyncpa %s2273, 1

</llo_original>
